<compile_context>
chip_gen: v5e
topology: v5e:2x2
jax: 0.10.0
libtpu: 0.0.40
codegen_flags: <defaults>
</compile_context>

<pallas_src>
import jax
import jax.numpy as jnp
from jax import lax
from jax.experimental import pallas as pl
from jax.experimental.pallas import tpu as pltpu

H = W = 32
C_IN = 3
C_CONV = 240
POOL = 8
HP = H // POOL            # 4
WP = W // POOL            # 4
N_WIN = HP * WP           # 16 pooling windows
WIN_PIX = POOL * POOL     # 64 pixels per window
FEAT = C_CONV * N_WIN     # 3840
HID = 40
C_OUT = 3
BLOCK_N = 8               # images per grid step (keeps conv intermediate ~0.5 MB)


def cccnn_kernel(x_ref, wc_ref, bc_ref, w1_ref, b1_ref, w2_ref, b2_ref,
                 o_ref, h_ref):
    m = pl.program_id(1)                       # pooling-window index (reduction axis)

    @pl.when(m == 0)
    def _init():
        h_ref[...] = jnp.zeros_like(h_ref)

    # 1x1 conv on this window's 64 pixels for all BLOCK_N images: one bf16 matmul.
    x = x_ref[0]                                               # [BLOCK_N*64, 3] bf16
    conv = jnp.dot(x, wc_ref[...],
                   preferred_element_type=jnp.float32)         # [BLOCK_N*64, 240] f32

    # 8x8 max-pool == max over the 64 window pixels; add conv bias after the max.
    pooled = jnp.max(conv.reshape(BLOCK_N, WIN_PIX, C_CONV), axis=1) \
        + bc_ref[...]                                          # [BLOCK_N, 240] f32

    # fc1 partial sum for this window against its pre-permuted weight slice.
    h_ref[...] += jnp.dot(pooled.astype(jnp.bfloat16), w1_ref[0],
                          preferred_element_type=jnp.float32)  # [BLOCK_N, 40] f32

    @pl.when(m == N_WIN - 1)
    def _finalize():
        h = jnp.maximum(h_ref[...] + b1_ref[...], 0.0)         # fc1 bias + ReLU
        o_ref[...] = jnp.dot(h, w2_ref[...],
                             preferred_element_type=jnp.float32) + b2_ref[...]


def cccnn_forward(x_nchw, params):
    """x_nchw: [N, 3, 32, 32] float32. Returns [N, 3] float32."""
    wc, bc, w1, b1, w2, b2 = params            # PyTorch-convention shapes
    N = x_nchw.shape[0]
    nb = pl.cdiv(N, BLOCK_N)
    n_pad = nb * BLOCK_N

    # ---- layout prep (plain JAX glue only) ----
    if n_pad != N:
        x_nchw = jnp.pad(x_nchw, ((0, n_pad - N), (0, 0), (0, 0), (0, 0)))
    # Gather pixels per 8x8 pooling window -> [16, n_pad*64, 3]; window m = i*4 + j.
    xw = x_nchw.reshape(n_pad, C_IN, HP, POOL, WP, POOL)
    xw = xw.transpose(2, 4, 0, 3, 5, 1)                        # (i, j, n, h8, w8, c)
    xw = xw.reshape(N_WIN, n_pad * WIN_PIX, C_IN).astype(jnp.bfloat16)

    wc_k = wc.T.astype(jnp.bfloat16)                           # [3, 240]
    bc_k = bc.reshape(1, C_CONV).astype(jnp.float32)           # [1, 240]
    # w1[k, c*16 + m] -> w1p[m, c, k]: window m multiplies its own weight slice.
    w1p = w1.reshape(HID, C_CONV, N_WIN).transpose(2, 1, 0).astype(jnp.bfloat16)
    b1_k = b1.reshape(1, HID).astype(jnp.float32)              # [1, 40]
    w2_k = w2.T.astype(jnp.float32)                            # [40, 3]
    b2_k = b2.reshape(1, C_OUT).astype(jnp.float32)            # [1, 3]

    out = pl.pallas_call(
        cccnn_kernel,
        out_shape=jax.ShapeDtypeStruct((n_pad, C_OUT), jnp.float32),
        grid=(nb, N_WIN),
        in_specs=[
            pl.BlockSpec((1, BLOCK_N * WIN_PIX, C_IN), lambda b, m: (m, b, 0)),
            pl.BlockSpec((C_IN, C_CONV), lambda b, m: (0, 0)),
            pl.BlockSpec((1, C_CONV), lambda b, m: (0, 0)),
            pl.BlockSpec((1, C_CONV, HID), lambda b, m: (m, 0, 0)),
            pl.BlockSpec((1, HID), lambda b, m: (0, 0)),
            pl.BlockSpec((HID, C_OUT), lambda b, m: (0, 0)),
            pl.BlockSpec((1, C_OUT), lambda b, m: (0, 0)),
        ],
        out_specs=pl.BlockSpec((BLOCK_N, C_OUT), lambda b, m: (b, 0)),
        scratch_shapes=[pltpu.VMEM((BLOCK_N, HID), jnp.float32)],
        compiler_params=pltpu.CompilerParams(
            dimension_semantics=("parallel", "arbitrary")),
    )(xw, wc_k, bc_k, w1p, b1_k, w2_k, b2_k)
    return out[:N]


def reference(x_nchw, params):
    """Pure-JAX reference replicating the PyTorch forward exactly."""
    wc, bc, w1, b1, w2, b2 = params
    N = x_nchw.shape[0]
    conv = jnp.einsum('nchw,oc->nohw', x_nchw, wc,
                      precision=lax.Precision.HIGHEST) + bc[None, :, None, None]
    pooled = conv.reshape(N, C_CONV, HP, POOL, WP, POOL).max(axis=(3, 5))
    feat = pooled.reshape(N, FEAT)            # (C, H, W) flatten order
    h = jnp.maximum(jnp.dot(feat, w1.T, precision=lax.Precision.HIGHEST) + b1, 0.0)
    return jnp.dot(h, w2.T, precision=lax.Precision.HIGHEST) + b2


def init_params(key):
    ks = jax.random.split(key, 6)

    def u(k, shape, fan_in):
        bound = 1.0 / jnp.sqrt(fan_in)
        return jax.random.uniform(k, shape, jnp.float32, -bound, bound)

    wc = u(ks[0], (C_CONV, C_IN), C_IN)        # Conv2d weight [240,3,1,1] squeezed
    bc = u(ks[1], (C_CONV,), C_IN)
    w1 = u(ks[2], (HID, FEAT), FEAT)           # Linear(3840, 40)
    b1 = u(ks[3], (HID,), FEAT)
    w2 = u(ks[4], (C_OUT, HID), HID)           # Linear(40, 3)
    b2 = u(ks[5], (C_OUT,), HID)
    return (wc, bc, w1, b1, w2, b2)


if __name__ == "__main__":
    key = jax.random.PRNGKey(0)
    kx, kp = jax.random.split(key)
    # forward() requires 3x32x32 patches (fc1 expects 240*4*4 = 3840 features)
    N = 4
    x = jax.random.normal(kx, (N, C_IN, H, W), jnp.float32)
    params = init_params(kp)

    out = jax.block_until_ready(cccnn_forward(x, params))
    ref = jax.block_until_ready(reference(x, params))
    assert out.shape == (N, C_OUT)
    if not jnp.allclose(out, ref, rtol=2e-2, atol=2e-2):
        raise AssertionError(f"mismatch:\nkernel={out}\nref={ref}")
    print("KERNEL_OK")
</pallas_src>

<mosaic_0001>
module attributes {stable_mosaic.version = 11 : i64} {
  func.func @cccnn_kernel(%arg0: i32, %arg1: i32, %arg2: memref<1x512x3xbf16, #tpu.memory_space<vmem>>, %arg3: memref<3x240xbf16, #tpu.memory_space<vmem>>, %arg4: memref<1x240xf32, #tpu.memory_space<vmem>>, %arg5: memref<1x240x40xbf16, #tpu.memory_space<vmem>>, %arg6: memref<1x40xf32, #tpu.memory_space<vmem>>, %arg7: memref<40x3xf32, #tpu.memory_space<vmem>>, %arg8: memref<1x3xf32, #tpu.memory_space<vmem>>, %arg9: memref<8x3xf32, #tpu.memory_space<vmem>>, %arg10: memref<8x40xf32, #tpu.memory_space<vmem>>) attributes {dimension_semantics = [#tpu.dimension_semantics<parallel>, #tpu.dimension_semantics<arbitrary>], iteration_bounds = array<i64: 1, 16>, scalar_prefetch = 0 : i64, scratch_operands = 1 : i64, tpu.core_type = #tpu.core_type<tc>, window_params = [{transform_indices = @transform_0, window_bounds = array<i64: 1, 512, 3>}, {pipeline_mode = #tpu.pipeline_mode<synchronous>, transform_indices = @transform_1, window_bounds = array<i64: 3, 240>}, {pipeline_mode = #tpu.pipeline_mode<synchronous>, transform_indices = @transform_2, window_bounds = array<i64: 1, 240>}, {transform_indices = @transform_3, window_bounds = array<i64: 1, 240, 40>}, {pipeline_mode = #tpu.pipeline_mode<synchronous>, transform_indices = @transform_4, window_bounds = array<i64: 1, 40>}, {pipeline_mode = #tpu.pipeline_mode<synchronous>, transform_indices = @transform_5, window_bounds = array<i64: 40, 3>}, {pipeline_mode = #tpu.pipeline_mode<synchronous>, transform_indices = @transform_6, window_bounds = array<i64: 1, 3>}, {transform_indices = @transform_7, window_bounds = array<i64: 8, 3>}]} {
    %c0_i32 = arith.constant 0 : i32
    %0 = arith.cmpi eq, %arg1, %c0_i32 : i32
    %1 = arith.extui %0 : i1 to i32
    %c0_i32_0 = arith.constant 0 : i32
    %2 = arith.cmpi ne, %1, %c0_i32_0 : i32
    scf.if %2 {
      %cst_17 = arith.constant 0.000000e+00 : f32
      %22 = vector.broadcast %cst_17 : f32 to vector<8x40xf32>
      %c0_18 = arith.constant 0 : index
      %c0_19 = arith.constant 0 : index
      %23 = vector.load %arg10[%c0_18, %c0_19] : memref<8x40xf32, #tpu.memory_space<vmem>>, vector<8x40xf32>
      tpu.vector_store %arg10[%c0_18, %c0_19], %22 {strides = array<i32>} : memref<8x40xf32, #tpu.memory_space<vmem>>, vector<8x40xf32>,
    } else {
    }
    %c0 = arith.constant 0 : index
    %c0_1 = arith.constant 0 : index
    %c0_2 = arith.constant 0 : index
    %3 = vector.load %arg2[%c0, %c0_1, %c0_2] : memref<1x512x3xbf16, #tpu.memory_space<vmem>>, vector<1x512x3xbf16>
    %4 = vector.shape_cast %3 : vector<1x512x3xbf16> to vector<512x3xbf16>
    %c0_3 = arith.constant 0 : index
    %c0_4 = arith.constant 0 : index
    %5 = vector.load %arg3[%c0_3, %c0_4] : memref<3x240xbf16, #tpu.memory_space<vmem>>, vector<3x240xbf16>
    %cst = arith.constant dense<0.000000e+00> : vector<512x240xf32>
    %6 = tpu.matmul %4, %5, %cst {dimension_numbers = #tpu.dot_dimension_numbers<[1], [0], [0], [1], [0, 0, 1, 1], [], []>} : vector<512x3xbf16>, vector<3x240xbf16>, vector<512x240xf32> -> vector<512x240xf32>
    %7 = vector.shape_cast %6 : vector<512x240xf32> to vector<8x64x240xf32>
    %cst_5 = arith.constant dense<0xFF800000> : vector<8x240xf32>
    %8 = vector.multi_reduction <maximumf>, %7, %cst_5 [1] : vector<8x64x240xf32> to vector<8x240xf32>
    %c0_6 = arith.constant 0 : index
    %c0_7 = arith.constant 0 : index
    %9 = vector.load %arg4[%c0_6, %c0_7] : memref<1x240xf32, #tpu.memory_space<vmem>>, vector<1x240xf32>
    %10 = vector.broadcast %9 : vector<1x240xf32> to vector<8x240xf32>
    %11 = arith.addf %8, %10 : vector<8x240xf32>
    %c0_8 = arith.constant 0 : index
    %c0_9 = arith.constant 0 : index
    %12 = vector.load %arg10[%c0_8, %c0_9] : memref<8x40xf32, #tpu.memory_space<vmem>>, vector<8x40xf32>
    %13 = arith.truncf %11 : vector<8x240xf32> to vector<8x240xbf16>
    %c0_10 = arith.constant 0 : index
    %c0_11 = arith.constant 0 : index
    %c0_12 = arith.constant 0 : index
    %14 = vector.load %arg5[%c0_10, %c0_11, %c0_12] : memref<1x240x40xbf16, #tpu.memory_space<vmem>>, vector<1x240x40xbf16>
    %15 = vector.shape_cast %14 : vector<1x240x40xbf16> to vector<240x40xbf16>
    %cst_13 = arith.constant dense<0.000000e+00> : vector<8x40xf32>
    %16 = tpu.matmul %13, %15, %cst_13 {dimension_numbers = #tpu.dot_dimension_numbers<[1], [0], [0], [1], [0, 0, 1, 1], [], []>} : vector<8x240xbf16>, vector<240x40xbf16>, vector<8x40xf32> -> vector<8x40xf32>
    %17 = arith.addf %12, %16 : vector<8x40xf32>
    %c0_14 = arith.constant 0 : index
    %c0_15 = arith.constant 0 : index
    %18 = vector.load %arg10[%c0_14, %c0_15] : memref<8x40xf32, #tpu.memory_space<vmem>>, vector<8x40xf32>
    tpu.vector_store %arg10[%c0_14, %c0_15], %17 {strides = array<i32>} : memref<8x40xf32, #tpu.memory_space<vmem>>, vector<8x40xf32>,
    %c15_i32 = arith.constant 15 : i32
    %19 = arith.cmpi eq, %arg1, %c15_i32 : i32
    %20 = arith.extui %19 : i1 to i32
    %c0_i32_16 = arith.constant 0 : i32
    %21 = arith.cmpi ne, %20, %c0_i32_16 : i32
    scf.if %21 {
      %c0_17 = arith.constant 0 : index
      %c0_18 = arith.constant 0 : index
      %22 = vector.load %arg10[%c0_17, %c0_18] : memref<8x40xf32, #tpu.memory_space<vmem>>, vector<8x40xf32>
      %c0_19 = arith.constant 0 : index
      %c0_20 = arith.constant 0 : index
      %23 = vector.load %arg6[%c0_19, %c0_20] : memref<1x40xf32, #tpu.memory_space<vmem>>, vector<1x40xf32>
      %24 = vector.broadcast %23 : vector<1x40xf32> to vector<8x40xf32>
      %25 = arith.addf %22, %24 : vector<8x40xf32>
      %cst_21 = arith.constant 0.000000e+00 : f32
      %26 = vector.broadcast %cst_21 : f32 to vector<8x40xf32>
      %27 = arith.maximumf %25, %26 : vector<8x40xf32>
      %c0_22 = arith.constant 0 : index
      %c0_23 = arith.constant 0 : index
      %28 = vector.load %arg7[%c0_22, %c0_23] : memref<40x3xf32, #tpu.memory_space<vmem>>, vector<40x3xf32>
      %cst_24 = arith.constant dense<0.000000e+00> : vector<8x3xf32>
      %29 = tpu.matmul %27, %28, %cst_24 {dimension_numbers = #tpu.dot_dimension_numbers<[1], [0], [0], [1], [0, 0, 1, 1], [], []>} : vector<8x40xf32>, vector<40x3xf32>, vector<8x3xf32> -> vector<8x3xf32>
      %c0_25 = arith.constant 0 : index
      %c0_26 = arith.constant 0 : index
      %30 = vector.load %arg8[%c0_25, %c0_26] : memref<1x3xf32, #tpu.memory_space<vmem>>, vector<1x3xf32>
      %31 = vector.broadcast %30 : vector<1x3xf32> to vector<8x3xf32>
      %32 = arith.addf %29, %31 : vector<8x3xf32>
      %c0_27 = arith.constant 0 : index
      %c0_28 = arith.constant 0 : index
      %33 = vector.load %arg9[%c0_27, %c0_28] : memref<8x3xf32, #tpu.memory_space<vmem>>, vector<8x3xf32>
      tpu.vector_store %arg9[%c0_27, %c0_28], %32 {strides = array<i32>} : memref<8x3xf32, #tpu.memory_space<vmem>>, vector<8x3xf32>,
    } else {
    }
    return
  }
  func.func @transform_0(%arg0: i32, %arg1: i32) -> (i32, i32, i32) {
    %c0_i32 = arith.constant 0 : i32
    %c0_i32_0 = arith.constant 0 : i32
    return %arg1, %arg0, %c0_i32 : i32, i32, i32
  }
  func.func @transform_1(%arg0: i32, %arg1: i32) -> (i32, i32) {
    %c0_i32 = arith.constant 0 : i32
    %c0_i32_0 = arith.constant 0 : i32
    %c0_i32_1 = arith.constant 0 : i32
    return %c0_i32, %c0_i32_0 : i32, i32
  }
  func.func @transform_2(%arg0: i32, %arg1: i32) -> (i32, i32) {
    %c0_i32 = arith.constant 0 : i32
    %c0_i32_0 = arith.constant 0 : i32
    %c0_i32_1 = arith.constant 0 : i32
    return %c0_i32, %c0_i32_0 : i32, i32
  }
  func.func @transform_3(%arg0: i32, %arg1: i32) -> (i32, i32, i32) {
    %c0_i32 = arith.constant 0 : i32
    %c0_i32_0 = arith.constant 0 : i32
    %c0_i32_1 = arith.constant 0 : i32
    return %arg1, %c0_i32, %c0_i32_0 : i32, i32, i32
  }
  func.func @transform_4(%arg0: i32, %arg1: i32) -> (i32, i32) {
    %c0_i32 = arith.constant 0 : i32
    %c0_i32_0 = arith.constant 0 : i32
    %c0_i32_1 = arith.constant 0 : i32
    return %c0_i32, %c0_i32_0 : i32, i32
  }
  func.func @transform_5(%arg0: i32, %arg1: i32) -> (i32, i32) {
    %c0_i32 = arith.constant 0 : i32
    %c0_i32_0 = arith.constant 0 : i32
    %c0_i32_1 = arith.constant 0 : i32
    return %c0_i32, %c0_i32_0 : i32, i32
  }
  func.func @transform_6(%arg0: i32, %arg1: i32) -> (i32, i32) {
    %c0_i32 = arith.constant 0 : i32
    %c0_i32_0 = arith.constant 0 : i32
    %c0_i32_1 = arith.constant 0 : i32
    return %c0_i32, %c0_i32_0 : i32, i32
  }
  func.func @transform_7(%arg0: i32, %arg1: i32) -> (i32, i32) {
    %c0_i32 = arith.constant 0 : i32
    %c0_i32_0 = arith.constant 0 : i32
    return %arg0, %c0_i32 : i32, i32
  }
}

</mosaic_0001>

<llo_original>
// kernel: tpu_custom_call.1
$region0: #{tpu_custom_call.1}
  #allocation0 [shape = 'u32[]', space=smem, size = 0x4, offset = 0x4, fixed_abs, tag = 'smem constant byte address 0x4 - core index']
  #allocation1 [shape = 'u32[72,128]{1,0:T(1,128)}', space=vmem, size = 0x9000, scoped, tag = 'internal scratch']
  #allocation2 [shape = 'f32[8,40]{1,0:T(8,128)}', space=vmem, size = 0x1000, scoped, tag = 'scratch operand']
  %s0 = inlined_call_operand.vmem [shape: bf16[16,512,3], index: 0, kind: input, shape index: {}]
  %s1 = inlined_call_operand.vmem [shape: bf16[3,240], index: 1, kind: input, shape index: {}]
  %s2 = inlined_call_operand.vmem [shape: f32[1,240], index: 2, kind: input, shape index: {}]
  %s3 = inlined_call_operand.vmem [shape: bf16[16,240,40], index: 3, kind: input, shape index: {}]
  %s4 = inlined_call_operand.vmem [shape: f32[1,40], index: 4, kind: input, shape index: {}]
  %s5 = inlined_call_operand.vmem [shape: f32[40,3], index: 5, kind: input, shape index: {}]
  %s6 = inlined_call_operand.vmem [shape: f32[1,3], index: 6, kind: input, shape index: {}]
  %s7 = inlined_call_operand.vmem [shape: f32[8,3], index: 7, kind: output, shape index: {}]
  %s8 = sld [smem:[#allocation0]]
  $region69: #{tpu_custom_call.1} parent=0
    _
  %s10 = ssub.s32 1, %s8
  %s11 = scalar_select 0, %s10, %s8
  loop: start=0, step=1, limit=18
  $region2: #{tpu_custom_call.1} parent=0 // loop_pre_header
    _
  $region3: #{tpu_custom_call.1} parent=0 // loop_header
    %s13 = sphi 0, %s17
    %p14 = scmp.ge.s32.totalorder %s13, 18
    %s20 = sphi 0, %s32
    %s21 = sphi 0, %s28
    %s22 = sphi 0, %s20
    %s23 = sphi 0, %s21
    %s24 = sphi 0, %s22
    %s25 = sphi 0, %s23
    %s37 = sphi 0, %s39
    %s40 = sphi 0, %s37
    %s41 = sphi 0, %s40
    %s57 = sphi 0, %s41
    %s61 = sphi 0, %s61
    %s63 = sphi 0, %s61
    %s64 = sphi 0, %s63
    %s78 = sphi 0, %s64
    %s82 = sphi 0, %s82
    %s84 = sphi 0, %s82
    %s85 = sphi 0, %s84
    %s99 = sphi 0, %s85
    %s105 = sphi 0, %s107
    %s108 = sphi 0, %s105
    %s109 = sphi 0, %s108
    %s125 = sphi 0, %s109
    %s129 = sphi 0, %s129
    %s131 = sphi 0, %s129
    %s132 = sphi 0, %s131
    %s146 = sphi 0, %s132
    %s150 = sphi 0, %s150
    %s152 = sphi 0, %s150
    %s153 = sphi 0, %s152
    %s167 = sphi 0, %s153
    %s171 = sphi 0, %s171
    %s173 = sphi 0, %s171
    %s174 = sphi 0, %s173
    %s188 = sphi 0, %s174
    %s194 = sphi 0, %s196
    %s197 = sphi 0, %s194
    %s198 = sphi 0, %s197
    %s214 = sphi 0, %s198
  $region4: #{tpu_custom_call.1} parent=0 // loop_header_branch
    %16 = sbr.rel (%p14) target = $region8
  $region5: #{tpu_custom_call.1} parent=0 // loop_body
    %s18 = ssub.s32 %s13, 1
    %s19 = ssub.s32 %s13, 2
    %s26 = sadd.s32 1, %s21
    %p27 = scmp.ge.s32.totalorder %s26, 16
    %s28 = scalar_select %p27, 0, %s26
    %s29 = sadd.s32 1, %s20
    %s30 = scalar_select %p27, %s29, %s20
    %p31 = scmp.ge.s32.totalorder %s30, 1
    %s32 = scalar_select %p31, 0, %s30
    %s33 = ssub.s32 %s21, %s28
    %s34 = ssub.s32 %s20, %s32
    %s35 = sor.u32 %s33, %s34
    %p36 = scmp.eq.s32.totalorder %s35, 0
    %s38 = sadd.s32 %s37, 1
    %s39 = scalar_select %p36, %s37, %s38
    %p42 = pneg %p36
    %p43 = scmp.eq.s32.totalorder %s13, 15
    %p44 = por %p42, %p43
    %p45 = scmp.ne.s32.totalorder %s37, %s40
    %p46 = scmp.eq.s32.totalorder %s13, 0
    %p47 = por %p45, %p46
    %p48 = scmp.ne.s32.totalorder %s37, %s40
    %p49 = scmp.eq.s32.totalorder %s18, 15
    %p50 = por %p48, %p49
    %p51 = scmp.ne.s32.totalorder %s40, %s41
    %p52 = scmp.eq.s32.totalorder %s18, 0
    %p53 = por %p51, %p52
    %p54 = scmp.ne.s32.totalorder %s40, %s41
    %p55 = scmp.eq.s32.totalorder %s19, 15
    %p56 = por %p54, %p55
    %p58 = scmp.ne.s32.totalorder %s41, %s57
    %p59 = scmp.eq.s32.totalorder %s19, 0
    %p60 = por %p58, %p59
    %s62 = sadd.s32 %s61, 1
    %p65 = scmp.eq.s32.totalorder %s13, 15
    %p66 = scmp.ne.s32.totalorder %s61, %s63
    %p67 = scmp.eq.s32.totalorder %s13, 0
    %p68 = por %p66, %p67
    %p69 = scmp.ne.s32.totalorder %s61, %s63
    %p70 = scmp.eq.s32.totalorder %s18, 15
    %p71 = por %p69, %p70
    %p72 = scmp.ne.s32.totalorder %s63, %s64
    %p73 = scmp.eq.s32.totalorder %s18, 0
    %p74 = por %p72, %p73
    %p75 = scmp.ne.s32.totalorder %s63, %s64
    %p76 = scmp.eq.s32.totalorder %s19, 15
    %p77 = por %p75, %p76
    %p79 = scmp.ne.s32.totalorder %s64, %s78
    %p80 = scmp.eq.s32.totalorder %s19, 0
    %p81 = por %p79, %p80
    %s83 = sadd.s32 %s82, 1
    %p86 = scmp.eq.s32.totalorder %s13, 15
    %p87 = scmp.ne.s32.totalorder %s82, %s84
    %p88 = scmp.eq.s32.totalorder %s13, 0
    %p89 = por %p87, %p88
    %p90 = scmp.ne.s32.totalorder %s82, %s84
    %p91 = scmp.eq.s32.totalorder %s18, 15
    %p92 = por %p90, %p91
    %p93 = scmp.ne.s32.totalorder %s84, %s85
    %p94 = scmp.eq.s32.totalorder %s18, 0
    %p95 = por %p93, %p94
    %p96 = scmp.ne.s32.totalorder %s84, %s85
    %p97 = scmp.eq.s32.totalorder %s19, 15
    %p98 = por %p96, %p97
    %p100 = scmp.ne.s32.totalorder %s85, %s99
    %p101 = scmp.eq.s32.totalorder %s19, 0
    %p102 = por %p100, %p101
    %s103 = ssub.s32 %s21, %s28
    %p104 = scmp.eq.s32.totalorder %s103, 0
    %s106 = sadd.s32 %s105, 1
    %s107 = scalar_select %p104, %s105, %s106
    %p110 = pneg %p104
    %p111 = scmp.eq.s32.totalorder %s13, 15
    %p112 = por %p110, %p111
    %p113 = scmp.ne.s32.totalorder %s105, %s108
    %p114 = scmp.eq.s32.totalorder %s13, 0
    %p115 = por %p113, %p114
    %p116 = scmp.ne.s32.totalorder %s105, %s108
    %p117 = scmp.eq.s32.totalorder %s18, 15
    %p118 = por %p116, %p117
    %p119 = scmp.ne.s32.totalorder %s108, %s109
    %p120 = scmp.eq.s32.totalorder %s18, 0
    %p121 = por %p119, %p120
    %p122 = scmp.ne.s32.totalorder %s108, %s109
    %p123 = scmp.eq.s32.totalorder %s19, 15
    %p124 = por %p122, %p123
    %p126 = scmp.ne.s32.totalorder %s109, %s125
    %p127 = scmp.eq.s32.totalorder %s19, 0
    %p128 = por %p126, %p127
    %s130 = sadd.s32 %s129, 1
    %p133 = scmp.eq.s32.totalorder %s13, 15
    %p134 = scmp.ne.s32.totalorder %s129, %s131
    %p135 = scmp.eq.s32.totalorder %s13, 0
    %p136 = por %p134, %p135
    %p137 = scmp.ne.s32.totalorder %s129, %s131
    %p138 = scmp.eq.s32.totalorder %s18, 15
    %p139 = por %p137, %p138
    %p140 = scmp.ne.s32.totalorder %s131, %s132
    %p141 = scmp.eq.s32.totalorder %s18, 0
    %p142 = por %p140, %p141
    %p143 = scmp.ne.s32.totalorder %s131, %s132
    %p144 = scmp.eq.s32.totalorder %s19, 15
    %p145 = por %p143, %p144
    %p147 = scmp.ne.s32.totalorder %s132, %s146
    %p148 = scmp.eq.s32.totalorder %s19, 0
    %p149 = por %p147, %p148
    %s151 = sadd.s32 %s150, 1
    %p154 = scmp.eq.s32.totalorder %s13, 15
    %p155 = scmp.ne.s32.totalorder %s150, %s152
    %p156 = scmp.eq.s32.totalorder %s13, 0
    %p157 = por %p155, %p156
    %p158 = scmp.ne.s32.totalorder %s150, %s152
    %p159 = scmp.eq.s32.totalorder %s18, 15
    %p160 = por %p158, %p159
    %p161 = scmp.ne.s32.totalorder %s152, %s153
    %p162 = scmp.eq.s32.totalorder %s18, 0
    %p163 = por %p161, %p162
    %p164 = scmp.ne.s32.totalorder %s152, %s153
    %p165 = scmp.eq.s32.totalorder %s19, 15
    %p166 = por %p164, %p165
    %p168 = scmp.ne.s32.totalorder %s153, %s167
    %p169 = scmp.eq.s32.totalorder %s19, 0
    %p170 = por %p168, %p169
    %s172 = sadd.s32 %s171, 1
    %p175 = scmp.eq.s32.totalorder %s13, 15
    %p176 = scmp.ne.s32.totalorder %s171, %s173
    %p177 = scmp.eq.s32.totalorder %s13, 0
    %p178 = por %p176, %p177
    %p179 = scmp.ne.s32.totalorder %s171, %s173
    %p180 = scmp.eq.s32.totalorder %s18, 15
    %p181 = por %p179, %p180
    %p182 = scmp.ne.s32.totalorder %s173, %s174
    %p183 = scmp.eq.s32.totalorder %s18, 0
    %p184 = por %p182, %p183
    %p185 = scmp.ne.s32.totalorder %s173, %s174
    %p186 = scmp.eq.s32.totalorder %s19, 15
    %p187 = por %p185, %p186
    %p189 = scmp.ne.s32.totalorder %s174, %s188
    %p190 = scmp.eq.s32.totalorder %s19, 0
    %p191 = por %p189, %p190
    %s192 = ssub.s32 %s20, %s32
    %p193 = scmp.eq.s32.totalorder %s192, 0
    %s195 = sadd.s32 %s194, 1
    %s196 = scalar_select %p193, %s194, %s195
    %p199 = pneg %p193
    %p200 = scmp.eq.s32.totalorder %s13, 15
    %p201 = por %p199, %p200
    %p202 = scmp.ne.s32.totalorder %s194, %s197
    %p203 = scmp.eq.s32.totalorder %s13, 0
    %p204 = por %p202, %p203
    %p205 = scmp.ne.s32.totalorder %s194, %s197
    %p206 = scmp.eq.s32.totalorder %s18, 15
    %p207 = por %p205, %p206
    %p208 = scmp.ne.s32.totalorder %s197, %s198
    %p209 = scmp.eq.s32.totalorder %s18, 0
    %p210 = por %p208, %p209
    %p211 = scmp.ne.s32.totalorder %s197, %s198
    %p212 = scmp.eq.s32.totalorder %s19, 15
    %p213 = por %p211, %p212
    %p215 = scmp.ne.s32.totalorder %s198, %s214
    %p216 = scmp.eq.s32.totalorder %s19, 0
    %p217 = por %p215, %p216
    %p218 = scmp.le.s32.totalorder 1, %s13
    %p219 = scmp.lt.s32.totalorder %s13, 17
    %p220 = pnand %p218, %p219
    %p221 = pneg %p220
    // Predicated region
    $region9: #{tpu_custom_call.1} parent=5 // pred_check
      _
    $region10: #{tpu_custom_call.1} parent=5 // pred_check_branch
      %223 = sbr.rel (%p220) target = $region12
    $region11: #{tpu_custom_call.1} parent=5 // pred_region
      %s224 = ssub.s32 %s13, 1
      // Predicated region
      $region13: #{tpu_custom_call.1} parent=11 // pred_check
        %p225 = pneg %p74
      $region14: #{tpu_custom_call.1} parent=11 // pred_check_branch
        %227 = sbr.rel (%p225) target = $region16
      $region15: #{tpu_custom_call.1} parent=11 // pred_region
        _
      $region16: #{tpu_custom_call.1} parent=11 // pred_fallthru
        _
      // Predicated region
      $region17: #{tpu_custom_call.1} parent=11 // pred_check
        %p228 = pneg %p95
      $region18: #{tpu_custom_call.1} parent=11 // pred_check_branch
        %230 = sbr.rel (%p228) target = $region20
      $region19: #{tpu_custom_call.1} parent=11 // pred_region
        _
      $region20: #{tpu_custom_call.1} parent=11 // pred_fallthru
        _
      // Predicated region
      $region21: #{tpu_custom_call.1} parent=11 // pred_check
        %p231 = pneg %p142
      $region22: #{tpu_custom_call.1} parent=11 // pred_check_branch
        %233 = sbr.rel (%p231) target = $region24
      $region23: #{tpu_custom_call.1} parent=11 // pred_region
        _
      $region24: #{tpu_custom_call.1} parent=11 // pred_fallthru
        _
      // Predicated region
      $region25: #{tpu_custom_call.1} parent=11 // pred_check
        %p234 = pneg %p163
      $region26: #{tpu_custom_call.1} parent=11 // pred_check_branch
        %236 = sbr.rel (%p234) target = $region28
      $region27: #{tpu_custom_call.1} parent=11 // pred_region
        _
      $region28: #{tpu_custom_call.1} parent=11 // pred_fallthru
        _
      // Predicated region
      $region29: #{tpu_custom_call.1} parent=11 // pred_check
        %p237 = pneg %p184
      $region30: #{tpu_custom_call.1} parent=11 // pred_check_branch
        %239 = sbr.rel (%p237) target = $region32
      $region31: #{tpu_custom_call.1} parent=11 // pred_region
        _
      $region32: #{tpu_custom_call.1} parent=11 // pred_fallthru
        _
    $region12: #{tpu_custom_call.1} parent=5 // pred_fallthru
      _
    %p240 = scmp.lt.s32.totalorder %s13, 16
    // Predicated region
    $region33: #{tpu_custom_call.1} parent=5 // pred_check
      %p241 = pneg %p240
    $region34: #{tpu_custom_call.1} parent=5 // pred_check_branch
      %243 = sbr.rel (%p241) target = $region36
    $region35: #{tpu_custom_call.1} parent=5 // pred_region
      // Predicated region
      $region37: #{tpu_custom_call.1} parent=35 // pred_check
        %p244 = pneg %p47
      $region38: #{tpu_custom_call.1} parent=35 // pred_check_branch
        %246 = sbr.rel (%p244) target = $region40
      $region39: #{tpu_custom_call.1} parent=35 // pred_region
        %s247 = smul.u32 64, %s20
        %p248 = scmp.lt.s32.totalorder %s21, 15
        %s249 = scalar_select %p248, %s21, 15
        %p250 = scmp.lt.s32.totalorder %s247, 63
        %s251 = scalar_select %p250, %s247, 63
        %s252 = smul.addr %s249, 64
        %s253 = sadd.s32 %s251, %s252
        %s254 = smul.addr %s253, 4
        %s255 = scalar_lea.vmem %s0, %s254
        %s256 = smul.u32 64, %s20
      $region40: #{tpu_custom_call.1} parent=35 // pred_fallthru
        _
      // Predicated region
      $region41: #{tpu_custom_call.1} parent=35 // pred_check
        %p257 = pneg %p115
      $region42: #{tpu_custom_call.1} parent=35 // pred_check_branch
        %259 = sbr.rel (%p257) target = $region44
      $region43: #{tpu_custom_call.1} parent=35 // pred_region
        %p260 = scmp.lt.s32.totalorder %s21, 15
        %s261 = scalar_select %p260, %s21, 15
        %s262 = smul.addr %s261, 30
        %s263 = smul.addr %s262, 4
        %s264 = scalar_lea.vmem %s3, %s263
      $region44: #{tpu_custom_call.1} parent=35 // pred_fallthru
        _
    $region36: #{tpu_custom_call.1} parent=5 // pred_fallthru
      _
    %p265 = scmp.le.s32.totalorder 1, %s13
    %p266 = scmp.lt.s32.totalorder %s13, 17
    %p267 = pnand %p265, %p266
    %p268 = pneg %p267
    // Predicated region
    $region45: #{tpu_custom_call.1} parent=5 // pred_check
      _
    $region46: #{tpu_custom_call.1} parent=5 // pred_check_branch
      %270 = sbr.rel (%p267) target = $region48
    $region47: #{tpu_custom_call.1} parent=5 // pred_region
      %s271 = ssub.s32 %s13, 1
      %s272 = smul.u32 64, %s22
      %p273 = scmp.lt.s32.totalorder %s23, 15
      %s274 = scalar_select %p273, %s23, 15
      %p275 = scmp.lt.s32.totalorder %s272, 63
      %s276 = scalar_select %p275, %s272, 63
      %s277 = smul.addr %s274, 64
      %s278 = sadd.s32 %s276, %s277
      %s279 = smul.addr %s278, 4
      %s280 = scalar_lea.vmem %s0, %s279
      %p281 = pneg %p53
      %p282 = pneg %p50
      %p283 = pneg %p74
      %p284 = pneg %p71
      %p285 = pneg %p95
      %p286 = pneg %p92
      %p287 = scmp.lt.s32.totalorder %s23, 15
      %s288 = scalar_select %p287, %s23, 15
      %s289 = smul.addr %s288, 30
      %s290 = smul.addr %s289, 4
      %s291 = scalar_lea.vmem %s3, %s290
      %p292 = pneg %p121
      %p293 = pneg %p118
      %p294 = pneg %p142
      %p295 = pneg %p139
      %p296 = pneg %p163
      %p297 = pneg %p160
      %p298 = pneg %p184
      %p299 = pneg %p181
      %p300 = pneg %p210
      %p301 = pneg %p207
      %p302 = scmp.lt.s32.totalorder %s22, 0
      %s303 = scalar_select %p302, %s22, 0
      %s304 = smul.addr %s303, 8
      %s305 = scalar_lea.vmem %s7, %s304
      %s306 = smul.u32 64, %s22
      %p307 = scmp.lt.s32.totalorder %s23, 15
      %s308 = scalar_select %p307, %s23, 15
      %p309 = scmp.lt.s32.totalorder %s306, 63
      %s310 = scalar_select %p309, %s306, 63
      %s311 = smul.addr %s308, 64
      %s312 = sadd.s32 %s310, %s311
      %s313 = smul.addr %s312, 4
      %s314 = scalar_lea.vmem %s0, %s313
      %s315 = smul.u32 64, %s22
      %p316 = scmp.lt.s32.totalorder %s23, 15
      %s317 = scalar_select %p316, %s23, 15
      %s318 = smul.addr %s317, 30
      %s319 = smul.addr %s318, 4
      %s320 = scalar_lea.vmem %s3, %s319
      %p321 = scmp.lt.s32.totalorder %s22, 0
      %s322 = scalar_select %p321, %s22, 0
      %s323 = smul.addr %s322, 8
      %s324 = scalar_lea.vmem %s7, %s323
      %p326 = scmp.eq.s32.totalorder %s23, 0
      // Predicated region
      $region49: #{tpu_custom_call.1} parent=47 // pred_check
        %p327 = pneg %p326
      $region50: #{tpu_custom_call.1} parent=47 // pred_check_branch
        %329 = sbr.rel (%p327) target = $region52
      $region51: #{tpu_custom_call.1} parent=47 // pred_region
        %vm330 = vcmask 326656
        %331 = vst.msk [vmem:[#allocation2] sm:$0xff] %vm330, 0.0
      $region52: #{tpu_custom_call.1} parent=47 // pred_fallthru
        _
      %v332 = vld [vmem:[%s314] sm:$0xf]
      %v333 = vld [vmem:[%s314 + $0x4] sm:$0xf]
      %v334 = vld [vmem:[%s314 + $0x8] sm:$0xf]
      %v335 = vld [vmem:[%s314 + $0xc] sm:$0xf]
      %v336 = vld [vmem:[%s314 + $0x10] sm:$0xf]
      %v337 = vld [vmem:[%s314 + $0x14] sm:$0xf]
      %v338 = vld [vmem:[%s314 + $0x18] sm:$0xf]
      %v339 = vld [vmem:[%s314 + $0x1c] sm:$0xf]
      %v340 = vld [vmem:[%s314 + $0x20] sm:$0xf]
      %v341 = vld [vmem:[%s314 + $0x24] sm:$0xf]
      %v342 = vld [vmem:[%s314 + $0x28] sm:$0xf]
      %v343 = vld [vmem:[%s314 + $0x2c] sm:$0xf]
      %v344 = vld [vmem:[%s314 + $0x30] sm:$0xf]
      %v345 = vld [vmem:[%s314 + $0x34] sm:$0xf]
      %v346 = vld [vmem:[%s314 + $0x38] sm:$0xf]
      %v347 = vld [vmem:[%s314 + $0x3c] sm:$0xf]
      %v348 = vld [vmem:[%s314 + $0x40] sm:$0xf]
      %v349 = vld [vmem:[%s314 + $0x44] sm:$0xf]
      %v350 = vld [vmem:[%s314 + $0x48] sm:$0xf]
      %v351 = vld [vmem:[%s314 + $0x4c] sm:$0xf]
      %v352 = vld [vmem:[%s314 + $0x50] sm:$0xf]
      %v353 = vld [vmem:[%s314 + $0x54] sm:$0xf]
      %v354 = vld [vmem:[%s314 + $0x58] sm:$0xf]
      %v355 = vld [vmem:[%s314 + $0x5c] sm:$0xf]
      %v356 = vld [vmem:[%s314 + $0x60] sm:$0xf]
      %v357 = vld [vmem:[%s314 + $0x64] sm:$0xf]
      %v358 = vld [vmem:[%s314 + $0x68] sm:$0xf]
      %v359 = vld [vmem:[%s314 + $0x6c] sm:$0xf]
      %v360 = vld [vmem:[%s314 + $0x70] sm:$0xf]
      %v361 = vld [vmem:[%s314 + $0x74] sm:$0xf]
      %v362 = vld [vmem:[%s314 + $0x78] sm:$0xf]
      %v363 = vld [vmem:[%s314 + $0x7c] sm:$0xf]
      %v364 = vld [vmem:[%s314 + $0x80] sm:$0xf]
      %v365 = vld [vmem:[%s314 + $0x84] sm:$0xf]
      %v366 = vld [vmem:[%s314 + $0x88] sm:$0xf]
      %v367 = vld [vmem:[%s314 + $0x8c] sm:$0xf]
      %v368 = vld [vmem:[%s314 + $0x90] sm:$0xf]
      %v369 = vld [vmem:[%s314 + $0x94] sm:$0xf]
      %v370 = vld [vmem:[%s314 + $0x98] sm:$0xf]
      %v371 = vld [vmem:[%s314 + $0x9c] sm:$0xf]
      %v372 = vld [vmem:[%s314 + $0xa0] sm:$0xf]
      %v373 = vld [vmem:[%s314 + $0xa4] sm:$0xf]
      %v374 = vld [vmem:[%s314 + $0xa8] sm:$0xf]
      %v375 = vld [vmem:[%s314 + $0xac] sm:$0xf]
      %v376 = vld [vmem:[%s314 + $0xb0] sm:$0xf]
      %v377 = vld [vmem:[%s314 + $0xb4] sm:$0xf]
      %v378 = vld [vmem:[%s314 + $0xb8] sm:$0xf]
      %v379 = vld [vmem:[%s314 + $0xbc] sm:$0xf]
      %v380 = vld [vmem:[%s314 + $0xc0] sm:$0xf]
      %v381 = vld [vmem:[%s314 + $0xc4] sm:$0xf]
      %v382 = vld [vmem:[%s314 + $0xc8] sm:$0xf]
      %v383 = vld [vmem:[%s314 + $0xcc] sm:$0xf]
      %v384 = vld [vmem:[%s314 + $0xd0] sm:$0xf]
      %v385 = vld [vmem:[%s314 + $0xd4] sm:$0xf]
      %v386 = vld [vmem:[%s314 + $0xd8] sm:$0xf]
      %v387 = vld [vmem:[%s314 + $0xdc] sm:$0xf]
      %v388 = vld [vmem:[%s314 + $0xe0] sm:$0xf]
      %v389 = vld [vmem:[%s314 + $0xe4] sm:$0xf]
      %v390 = vld [vmem:[%s314 + $0xe8] sm:$0xf]
      %v391 = vld [vmem:[%s314 + $0xec] sm:$0xf]
      %v392 = vld [vmem:[%s314 + $0xf0] sm:$0xf]
      %v393 = vld [vmem:[%s314 + $0xf4] sm:$0xf]
      %v394 = vld [vmem:[%s314 + $0xf8] sm:$0xf]
      %v395 = vld [vmem:[%s314 + $0xfc] sm:$0xf]
      %v396 = vld [vmem:[%s1] sm:$0xf]
      %v461 = vunpack.c.l.b16 %v332
      %v462 = vunpack.c.l.b16 %v333
      %v463 = vunpack.c.l.b16 %v334
      %v464 = vunpack.c.l.b16 %v335
      %v465 = vunpack.c.l.b16 %v336
      %v466 = vunpack.c.l.b16 %v337
      %v467 = vunpack.c.l.b16 %v338
      %v468 = vunpack.c.l.b16 %v339
      %v469 = vunpack.c.l.b16 %v340
      %v470 = vunpack.c.l.b16 %v341
      %v471 = vunpack.c.l.b16 %v342
      %v472 = vunpack.c.l.b16 %v343
      %v473 = vunpack.c.l.b16 %v344
      %v474 = vunpack.c.l.b16 %v345
      %v475 = vunpack.c.l.b16 %v346
      %v476 = vunpack.c.l.b16 %v347
      %v477 = vunpack.c.l.b16 %v348
      %v478 = vunpack.c.l.b16 %v349
      %v479 = vunpack.c.l.b16 %v350
      %v480 = vunpack.c.l.b16 %v351
      %v481 = vunpack.c.l.b16 %v352
      %v482 = vunpack.c.l.b16 %v353
      %v483 = vunpack.c.l.b16 %v354
      %v484 = vunpack.c.l.b16 %v355
      %v485 = vunpack.c.l.b16 %v356
      %v486 = vunpack.c.l.b16 %v357
      %v487 = vunpack.c.l.b16 %v358
      %v488 = vunpack.c.l.b16 %v359
      %v489 = vunpack.c.l.b16 %v360
      %v490 = vunpack.c.l.b16 %v361
      %v491 = vunpack.c.l.b16 %v362
      %v492 = vunpack.c.l.b16 %v363
      %v493 = vunpack.c.l.b16 %v364
      %v494 = vunpack.c.l.b16 %v365
      %v495 = vunpack.c.l.b16 %v366
      %v496 = vunpack.c.l.b16 %v367
      %v497 = vunpack.c.l.b16 %v368
      %v498 = vunpack.c.l.b16 %v369
      %v499 = vunpack.c.l.b16 %v370
      %v500 = vunpack.c.l.b16 %v371
      %v501 = vunpack.c.l.b16 %v372
      %v502 = vunpack.c.l.b16 %v373
      %v503 = vunpack.c.l.b16 %v374
      %v504 = vunpack.c.l.b16 %v375
      %v505 = vunpack.c.l.b16 %v376
      %v506 = vunpack.c.l.b16 %v377
      %v507 = vunpack.c.l.b16 %v378
      %v508 = vunpack.c.l.b16 %v379
      %v509 = vunpack.c.l.b16 %v380
      %v510 = vunpack.c.l.b16 %v381
      %v511 = vunpack.c.l.b16 %v382
      %v512 = vunpack.c.l.b16 %v383
      %v513 = vunpack.c.l.b16 %v384
      %v514 = vunpack.c.l.b16 %v385
      %v515 = vunpack.c.l.b16 %v386
      %v516 = vunpack.c.l.b16 %v387
      %v517 = vunpack.c.l.b16 %v388
      %v518 = vunpack.c.l.b16 %v389
      %v519 = vunpack.c.l.b16 %v390
      %v520 = vunpack.c.l.b16 %v391
      %v521 = vunpack.c.l.b16 %v392
      %v522 = vunpack.c.l.b16 %v393
      %v523 = vunpack.c.l.b16 %v394
      %v524 = vunpack.c.l.b16 %v395
      %v525 = vpack.c.b16 %v462, %v461
      %v526 = vpack.c.b16 %v464, %v463
      %v527 = vpack.c.b16 %v466, %v465
      %v528 = vpack.c.b16 %v468, %v467
      %v529 = vpack.c.b16 %v470, %v469
      %v530 = vpack.c.b16 %v472, %v471
      %v531 = vpack.c.b16 %v474, %v473
      %v532 = vpack.c.b16 %v476, %v475
      %v533 = vpack.c.b16 %v478, %v477
      %v534 = vpack.c.b16 %v480, %v479
      %v535 = vpack.c.b16 %v482, %v481
      %v536 = vpack.c.b16 %v484, %v483
      %v537 = vpack.c.b16 %v486, %v485
      %v538 = vpack.c.b16 %v488, %v487
      %v539 = vpack.c.b16 %v490, %v489
      %v540 = vpack.c.b16 %v492, %v491
      %v541 = vpack.c.b16 %v494, %v493
      %v542 = vpack.c.b16 %v496, %v495
      %v543 = vpack.c.b16 %v498, %v497
      %v544 = vpack.c.b16 %v500, %v499
      %v545 = vpack.c.b16 %v502, %v501
      %v546 = vpack.c.b16 %v504, %v503
      %v547 = vpack.c.b16 %v506, %v505
      %v548 = vpack.c.b16 %v508, %v507
      %v549 = vpack.c.b16 %v510, %v509
      %v550 = vpack.c.b16 %v512, %v511
      %v551 = vpack.c.b16 %v514, %v513
      %v552 = vpack.c.b16 %v516, %v515
      %v553 = vpack.c.b16 %v518, %v517
      %v554 = vpack.c.b16 %v520, %v519
      %v555 = vpack.c.b16 %v522, %v521
      %v556 = vpack.c.b16 %v524, %v523
      %558 = vst [vmem:[#allocation1] ss:$4 sm:$0xff] %v396
      %v559 = vld.sshfl [vmem:[#allocation1] sm:$0xff pattern:$0x73625140]
      %v560 = vld.sshfl [vmem:[#allocation1 + $0x8] sm:$0xff pattern:$0x73625140]
      %vm561 = vcmask 23552
      %v563 = vsel %vm561, %v525, 0
      %v566 = vsel %vm561, %v526, 0
      %v569 = vsel %vm561, %v527, 0
      %v572 = vsel %vm561, %v528, 0
      %v575 = vsel %vm561, %v529, 0
      %v578 = vsel %vm561, %v530, 0
      %v581 = vsel %vm561, %v531, 0
      %v584 = vsel %vm561, %v532, 0
      %v587 = vsel %vm561, %v533, 0
      %v590 = vsel %vm561, %v534, 0
      %v593 = vsel %vm561, %v535, 0
      %v596 = vsel %vm561, %v536, 0
      %v599 = vsel %vm561, %v537, 0
      %v602 = vsel %vm561, %v538, 0
      %v605 = vsel %vm561, %v539, 0
      %v608 = vsel %vm561, %v540, 0
      %v611 = vsel %vm561, %v541, 0
      %v614 = vsel %vm561, %v542, 0
      %v617 = vsel %vm561, %v543, 0
      %v620 = vsel %vm561, %v544, 0
      %v623 = vsel %vm561, %v545, 0
      %v626 = vsel %vm561, %v546, 0
      %v629 = vsel %vm561, %v547, 0
      %v632 = vsel %vm561, %v548, 0
      %v635 = vsel %vm561, %v549, 0
      %v638 = vsel %vm561, %v550, 0
      %v641 = vsel %vm561, %v551, 0
      %v644 = vsel %vm561, %v552, 0
      %v647 = vsel %vm561, %v553, 0
      %v650 = vsel %vm561, %v554, 0
      %v653 = vsel %vm561, %v555, 0
      %v656 = vsel %vm561, %v556, 0
      %vm658 = vcmask 1040384
      %vm659 = vcmask 1041408
      %v660 = vsel %vm658, 4294967295, 65535
      %v661 = vsel %vm659, %v660, 0
      %v662 = vand.u32 %v559, %v661
      %v664 = vand.u32 %v560, %v661
      %666 = vmatpush.bf16.msra.mxu0 0
      %667 = vmatpush.bf16.msra.mxu0 0
      %668 = vmatpush.bf16.msra.mxu0 0
      %669 = vmatpush.bf16.msra.mxu0 0
      %670 = vmatpush.bf16.msra.mxu0 0
      %671 = vmatpush.bf16.msra.mxu0 0
      %672 = vmatpush.bf16.msra.mxu0 0
      %673 = vmatpush.bf16.msra.mxu0 %v662
      %674 = vmatmul.bf16.gmra.mxu0 %v563
      %v675 = vpop.f32.mrf.mxu0
      %v676 = vadd.f32 0.0, %v675
      %v677 = vpop.f32.mrf.mxu0
      %v678 = vadd.f32 0.0, %v677
      %679 = vmatmul.bf16.gmra.mxu0 %v566
      %v680 = vpop.f32.mrf.mxu0
      %v681 = vadd.f32 0.0, %v680
      %v682 = vpop.f32.mrf.mxu0
      %v683 = vadd.f32 0.0, %v682
      %684 = vmatmul.bf16.gmra.mxu0 %v569
      %v685 = vpop.f32.mrf.mxu0
      %v686 = vadd.f32 0.0, %v685
      %v687 = vpop.f32.mrf.mxu0
      %v688 = vadd.f32 0.0, %v687
      %689 = vmatmul.bf16.gmra.mxu0 %v572
      %v690 = vpop.f32.mrf.mxu0
      %v691 = vadd.f32 0.0, %v690
      %v692 = vpop.f32.mrf.mxu0
      %v693 = vadd.f32 0.0, %v692
      %694 = vmatmul.bf16.gmra.mxu0 %v575
      %v695 = vpop.f32.mrf.mxu0
      %v696 = vadd.f32 0.0, %v695
      %v697 = vpop.f32.mrf.mxu0
      %v698 = vadd.f32 0.0, %v697
      %699 = vmatmul.bf16.gmra.mxu0 %v578
      %v700 = vpop.f32.mrf.mxu0
      %v701 = vadd.f32 0.0, %v700
      %v702 = vpop.f32.mrf.mxu0
      %v703 = vadd.f32 0.0, %v702
      %704 = vmatmul.bf16.gmra.mxu0 %v581
      %v705 = vpop.f32.mrf.mxu0
      %v706 = vadd.f32 0.0, %v705
      %v707 = vpop.f32.mrf.mxu0
      %v708 = vadd.f32 0.0, %v707
      %709 = vmatmul.bf16.gmra.mxu0 %v584
      %v710 = vpop.f32.mrf.mxu0
      %v711 = vadd.f32 0.0, %v710
      %v712 = vpop.f32.mrf.mxu0
      %v713 = vadd.f32 0.0, %v712
      %714 = vmatmul.bf16.gmra.mxu0 %v587
      %v715 = vpop.f32.mrf.mxu0
      %v716 = vadd.f32 0.0, %v715
      %v717 = vpop.f32.mrf.mxu0
      %v718 = vadd.f32 0.0, %v717
      %719 = vmatmul.bf16.gmra.mxu0 %v590
      %v720 = vpop.f32.mrf.mxu0
      %v721 = vadd.f32 0.0, %v720
      %v722 = vpop.f32.mrf.mxu0
      %v723 = vadd.f32 0.0, %v722
      %724 = vmatmul.bf16.gmra.mxu0 %v593
      %v725 = vpop.f32.mrf.mxu0
      %v726 = vadd.f32 0.0, %v725
      %v727 = vpop.f32.mrf.mxu0
      %v728 = vadd.f32 0.0, %v727
      %729 = vmatmul.bf16.gmra.mxu0 %v596
      %v730 = vpop.f32.mrf.mxu0
      %v731 = vadd.f32 0.0, %v730
      %v732 = vpop.f32.mrf.mxu0
      %v733 = vadd.f32 0.0, %v732
      %734 = vmatmul.bf16.gmra.mxu0 %v599
      %v735 = vpop.f32.mrf.mxu0
      %v736 = vadd.f32 0.0, %v735
      %v737 = vpop.f32.mrf.mxu0
      %v738 = vadd.f32 0.0, %v737
      %739 = vmatmul.bf16.gmra.mxu0 %v602
      %v740 = vpop.f32.mrf.mxu0
      %v741 = vadd.f32 0.0, %v740
      %v742 = vpop.f32.mrf.mxu0
      %v743 = vadd.f32 0.0, %v742
      %744 = vmatmul.bf16.gmra.mxu0 %v605
      %v745 = vpop.f32.mrf.mxu0
      %v746 = vadd.f32 0.0, %v745
      %v747 = vpop.f32.mrf.mxu0
      %v748 = vadd.f32 0.0, %v747
      %749 = vmatmul.bf16.gmra.mxu0 %v608
      %v750 = vpop.f32.mrf.mxu0
      %v751 = vadd.f32 0.0, %v750
      %v752 = vpop.f32.mrf.mxu0
      %v753 = vadd.f32 0.0, %v752
      %754 = vmatmul.bf16.gmra.mxu0 %v611
      %v755 = vpop.f32.mrf.mxu0
      %v756 = vadd.f32 0.0, %v755
      %v757 = vpop.f32.mrf.mxu0
      %v758 = vadd.f32 0.0, %v757
      %759 = vmatmul.bf16.gmra.mxu0 %v614
      %v760 = vpop.f32.mrf.mxu0
      %v761 = vadd.f32 0.0, %v760
      %v762 = vpop.f32.mrf.mxu0
      %v763 = vadd.f32 0.0, %v762
      %764 = vmatmul.bf16.gmra.mxu0 %v617
      %v765 = vpop.f32.mrf.mxu0
      %v766 = vadd.f32 0.0, %v765
      %v767 = vpop.f32.mrf.mxu0
      %v768 = vadd.f32 0.0, %v767
      %769 = vmatmul.bf16.gmra.mxu0 %v620
      %v770 = vpop.f32.mrf.mxu0
      %v771 = vadd.f32 0.0, %v770
      %v772 = vpop.f32.mrf.mxu0
      %v773 = vadd.f32 0.0, %v772
      %774 = vmatmul.bf16.gmra.mxu0 %v623
      %v775 = vpop.f32.mrf.mxu0
      %v776 = vadd.f32 0.0, %v775
      %v777 = vpop.f32.mrf.mxu0
      %v778 = vadd.f32 0.0, %v777
      %779 = vmatmul.bf16.gmra.mxu0 %v626
      %v780 = vpop.f32.mrf.mxu0
      %v781 = vadd.f32 0.0, %v780
      %v782 = vpop.f32.mrf.mxu0
      %v783 = vadd.f32 0.0, %v782
      %784 = vmatmul.bf16.gmra.mxu0 %v629
      %v785 = vpop.f32.mrf.mxu0
      %v786 = vadd.f32 0.0, %v785
      %v787 = vpop.f32.mrf.mxu0
      %v788 = vadd.f32 0.0, %v787
      %789 = vmatmul.bf16.gmra.mxu0 %v632
      %v790 = vpop.f32.mrf.mxu0
      %v791 = vadd.f32 0.0, %v790
      %v792 = vpop.f32.mrf.mxu0
      %v793 = vadd.f32 0.0, %v792
      %794 = vmatmul.bf16.gmra.mxu0 %v635
      %v795 = vpop.f32.mrf.mxu0
      %v796 = vadd.f32 0.0, %v795
      %v797 = vpop.f32.mrf.mxu0
      %v798 = vadd.f32 0.0, %v797
      %799 = vmatmul.bf16.gmra.mxu0 %v638
      %v800 = vpop.f32.mrf.mxu0
      %v801 = vadd.f32 0.0, %v800
      %v802 = vpop.f32.mrf.mxu0
      %v803 = vadd.f32 0.0, %v802
      %804 = vmatmul.bf16.gmra.mxu0 %v641
      %v805 = vpop.f32.mrf.mxu0
      %v806 = vadd.f32 0.0, %v805
      %v807 = vpop.f32.mrf.mxu0
      %v808 = vadd.f32 0.0, %v807
      %809 = vmatmul.bf16.gmra.mxu0 %v644
      %v810 = vpop.f32.mrf.mxu0
      %v811 = vadd.f32 0.0, %v810
      %v812 = vpop.f32.mrf.mxu0
      %v813 = vadd.f32 0.0, %v812
      %814 = vmatmul.bf16.gmra.mxu0 %v647
      %v815 = vpop.f32.mrf.mxu0
      %v816 = vadd.f32 0.0, %v815
      %v817 = vpop.f32.mrf.mxu0
      %v818 = vadd.f32 0.0, %v817
      %819 = vmatmul.bf16.gmra.mxu0 %v650
      %v820 = vpop.f32.mrf.mxu0
      %v821 = vadd.f32 0.0, %v820
      %v822 = vpop.f32.mrf.mxu0
      %v823 = vadd.f32 0.0, %v822
      %824 = vmatmul.bf16.gmra.mxu0 %v653
      %v825 = vpop.f32.mrf.mxu0
      %v826 = vadd.f32 0.0, %v825
      %v827 = vpop.f32.mrf.mxu0
      %v828 = vadd.f32 0.0, %v827
      %829 = vmatmul.bf16.gmra.mxu0 %v656
      %v830 = vpop.f32.mrf.mxu0
      %v831 = vadd.f32 0.0, %v830
      %v832 = vpop.f32.mrf.mxu0
      %v833 = vadd.f32 0.0, %v832
      %834 = vdwg.mxu0
      %835 = vmatpush.bf16.msra.mxu0 0
      %836 = vmatpush.bf16.msra.mxu0 0
      %837 = vmatpush.bf16.msra.mxu0 0
      %838 = vmatpush.bf16.msra.mxu0 0
      %839 = vmatpush.bf16.msra.mxu0 0
      %840 = vmatpush.bf16.msra.mxu0 0
      %841 = vmatpush.bf16.msra.mxu0 0
      %842 = vmatpush.bf16.msra.mxu0 %v664
      %843 = vmatmul.bf16.gmra.mxu0 %v563
      %v844 = vpop.f32.mrf.mxu0
      %v845 = vadd.f32 0.0, %v844
      %v846 = vpop.f32.mrf.mxu0
      %v847 = vadd.f32 0.0, %v846
      %848 = vmatmul.bf16.gmra.mxu0 %v566
      %v849 = vpop.f32.mrf.mxu0
      %v850 = vadd.f32 0.0, %v849
      %v851 = vpop.f32.mrf.mxu0
      %v852 = vadd.f32 0.0, %v851
      %853 = vmatmul.bf16.gmra.mxu0 %v569
      %v854 = vpop.f32.mrf.mxu0
      %v855 = vadd.f32 0.0, %v854
      %v856 = vpop.f32.mrf.mxu0
      %v857 = vadd.f32 0.0, %v856
      %858 = vmatmul.bf16.gmra.mxu0 %v572
      %v859 = vpop.f32.mrf.mxu0
      %v860 = vadd.f32 0.0, %v859
      %v861 = vpop.f32.mrf.mxu0
      %v862 = vadd.f32 0.0, %v861
      %863 = vmatmul.bf16.gmra.mxu0 %v575
      %v864 = vpop.f32.mrf.mxu0
      %v865 = vadd.f32 0.0, %v864
      %v866 = vpop.f32.mrf.mxu0
      %v867 = vadd.f32 0.0, %v866
      %868 = vmatmul.bf16.gmra.mxu0 %v578
      %v869 = vpop.f32.mrf.mxu0
      %v870 = vadd.f32 0.0, %v869
      %v871 = vpop.f32.mrf.mxu0
      %v872 = vadd.f32 0.0, %v871
      %873 = vmatmul.bf16.gmra.mxu0 %v581
      %v874 = vpop.f32.mrf.mxu0
      %v875 = vadd.f32 0.0, %v874
      %v876 = vpop.f32.mrf.mxu0
      %v877 = vadd.f32 0.0, %v876
      %878 = vmatmul.bf16.gmra.mxu0 %v584
      %v879 = vpop.f32.mrf.mxu0
      %v880 = vadd.f32 0.0, %v879
      %v881 = vpop.f32.mrf.mxu0
      %v882 = vadd.f32 0.0, %v881
      %883 = vmatmul.bf16.gmra.mxu0 %v587
      %v884 = vpop.f32.mrf.mxu0
      %v885 = vadd.f32 0.0, %v884
      %v886 = vpop.f32.mrf.mxu0
      %v887 = vadd.f32 0.0, %v886
      %888 = vmatmul.bf16.gmra.mxu0 %v590
      %v889 = vpop.f32.mrf.mxu0
      %v890 = vadd.f32 0.0, %v889
      %v891 = vpop.f32.mrf.mxu0
      %v892 = vadd.f32 0.0, %v891
      %893 = vmatmul.bf16.gmra.mxu0 %v593
      %v894 = vpop.f32.mrf.mxu0
      %v895 = vadd.f32 0.0, %v894
      %v896 = vpop.f32.mrf.mxu0
      %v897 = vadd.f32 0.0, %v896
      %898 = vmatmul.bf16.gmra.mxu0 %v596
      %v899 = vpop.f32.mrf.mxu0
      %v900 = vadd.f32 0.0, %v899
      %v901 = vpop.f32.mrf.mxu0
      %v902 = vadd.f32 0.0, %v901
      %903 = vmatmul.bf16.gmra.mxu0 %v599
      %v904 = vpop.f32.mrf.mxu0
      %v905 = vadd.f32 0.0, %v904
      %v906 = vpop.f32.mrf.mxu0
      %v907 = vadd.f32 0.0, %v906
      %908 = vmatmul.bf16.gmra.mxu0 %v602
      %v909 = vpop.f32.mrf.mxu0
      %v910 = vadd.f32 0.0, %v909
      %v911 = vpop.f32.mrf.mxu0
      %v912 = vadd.f32 0.0, %v911
      %913 = vmatmul.bf16.gmra.mxu0 %v605
      %v914 = vpop.f32.mrf.mxu0
      %v915 = vadd.f32 0.0, %v914
      %v916 = vpop.f32.mrf.mxu0
      %v917 = vadd.f32 0.0, %v916
      %918 = vmatmul.bf16.gmra.mxu0 %v608
      %v919 = vpop.f32.mrf.mxu0
      %v920 = vadd.f32 0.0, %v919
      %v921 = vpop.f32.mrf.mxu0
      %v922 = vadd.f32 0.0, %v921
      %923 = vmatmul.bf16.gmra.mxu0 %v611
      %v924 = vpop.f32.mrf.mxu0
      %v925 = vadd.f32 0.0, %v924
      %v926 = vpop.f32.mrf.mxu0
      %v927 = vadd.f32 0.0, %v926
      %928 = vmatmul.bf16.gmra.mxu0 %v614
      %v929 = vpop.f32.mrf.mxu0
      %v930 = vadd.f32 0.0, %v929
      %v931 = vpop.f32.mrf.mxu0
      %v932 = vadd.f32 0.0, %v931
      %933 = vmatmul.bf16.gmra.mxu0 %v617
      %v934 = vpop.f32.mrf.mxu0
      %v935 = vadd.f32 0.0, %v934
      %v936 = vpop.f32.mrf.mxu0
      %v937 = vadd.f32 0.0, %v936
      %938 = vmatmul.bf16.gmra.mxu0 %v620
      %v939 = vpop.f32.mrf.mxu0
      %v940 = vadd.f32 0.0, %v939
      %v941 = vpop.f32.mrf.mxu0
      %v942 = vadd.f32 0.0, %v941
      %943 = vmatmul.bf16.gmra.mxu0 %v623
      %v944 = vpop.f32.mrf.mxu0
      %v945 = vadd.f32 0.0, %v944
      %v946 = vpop.f32.mrf.mxu0
      %v947 = vadd.f32 0.0, %v946
      %948 = vmatmul.bf16.gmra.mxu0 %v626
      %v949 = vpop.f32.mrf.mxu0
      %v950 = vadd.f32 0.0, %v949
      %v951 = vpop.f32.mrf.mxu0
      %v952 = vadd.f32 0.0, %v951
      %953 = vmatmul.bf16.gmra.mxu0 %v629
      %v954 = vpop.f32.mrf.mxu0
      %v955 = vadd.f32 0.0, %v954
      %v956 = vpop.f32.mrf.mxu0
      %v957 = vadd.f32 0.0, %v956
      %958 = vmatmul.bf16.gmra.mxu0 %v632
      %v959 = vpop.f32.mrf.mxu0
      %v960 = vadd.f32 0.0, %v959
      %v961 = vpop.f32.mrf.mxu0
      %v962 = vadd.f32 0.0, %v961
      %963 = vmatmul.bf16.gmra.mxu0 %v635
      %v964 = vpop.f32.mrf.mxu0
      %v965 = vadd.f32 0.0, %v964
      %v966 = vpop.f32.mrf.mxu0
      %v967 = vadd.f32 0.0, %v966
      %968 = vmatmul.bf16.gmra.mxu0 %v638
      %v969 = vpop.f32.mrf.mxu0
      %v970 = vadd.f32 0.0, %v969
      %v971 = vpop.f32.mrf.mxu0
      %v972 = vadd.f32 0.0, %v971
      %973 = vmatmul.bf16.gmra.mxu0 %v641
      %v974 = vpop.f32.mrf.mxu0
      %v975 = vadd.f32 0.0, %v974
      %v976 = vpop.f32.mrf.mxu0
      %v977 = vadd.f32 0.0, %v976
      %978 = vmatmul.bf16.gmra.mxu0 %v644
      %v979 = vpop.f32.mrf.mxu0
      %v980 = vadd.f32 0.0, %v979
      %v981 = vpop.f32.mrf.mxu0
      %v982 = vadd.f32 0.0, %v981
      %983 = vmatmul.bf16.gmra.mxu0 %v647
      %v984 = vpop.f32.mrf.mxu0
      %v985 = vadd.f32 0.0, %v984
      %v986 = vpop.f32.mrf.mxu0
      %v987 = vadd.f32 0.0, %v986
      %988 = vmatmul.bf16.gmra.mxu0 %v650
      %v989 = vpop.f32.mrf.mxu0
      %v990 = vadd.f32 0.0, %v989
      %v991 = vpop.f32.mrf.mxu0
      %v992 = vadd.f32 0.0, %v991
      %993 = vmatmul.bf16.gmra.mxu0 %v653
      %v994 = vpop.f32.mrf.mxu0
      %v995 = vadd.f32 0.0, %v994
      %v996 = vpop.f32.mrf.mxu0
      %v997 = vadd.f32 0.0, %v996
      %998 = vmatmul.bf16.gmra.mxu0 %v656
      %v999 = vpop.f32.mrf.mxu0
      %v1000 = vadd.f32 0.0, %v999
      %v1001 = vpop.f32.mrf.mxu0
      %v1002 = vadd.f32 0.0, %v1001
      %1003 = vdwg.mxu0
      %v1004 = vmax.f32 %v676, %v678
      %v1005 = vmax.f32 %v1004, %v681
      %v1006 = vmax.f32 %v1005, %v683
      %v1007 = vmax.f32 %v1006, %v686
      %v1008 = vmax.f32 %v1007, %v688
      %v1009 = vmax.f32 %v1008, %v691
      %v1010 = vmax.f32 %v1009, %v693
      %v1011 = vrot.slane %v1010, 4
      %v1012 = vmax.f32 %v1010, %v1011
      %v1013 = vrot.slane %v1012, 2
      %v1014 = vmax.f32 %v1012, %v1013
      %v1015 = vrot.slane %v1014, 1
      %v1016 = vmax.f32 %v1014, %v1015
      %vm1017 = vcmask 916480
      %v1018 = vsel %vm1017, %v845, -inf
      %v1019 = vsel %vm1017, %v847, -inf
      %v1020 = vmax.f32 %v1018, %v1019
      %v1021 = vsel %vm1017, %v850, -inf
      %v1022 = vmax.f32 %v1020, %v1021
      %v1023 = vsel %vm1017, %v852, -inf
      %v1024 = vmax.f32 %v1022, %v1023
      %v1025 = vsel %vm1017, %v855, -inf
      %v1026 = vmax.f32 %v1024, %v1025
      %v1027 = vsel %vm1017, %v857, -inf
      %v1028 = vmax.f32 %v1026, %v1027
      %v1029 = vsel %vm1017, %v860, -inf
      %v1030 = vmax.f32 %v1028, %v1029
      %v1031 = vsel %vm1017, %v862, -inf
      %v1032 = vmax.f32 %v1030, %v1031
      %v1033 = vrot.slane %v1032, 4
      %v1034 = vmax.f32 %v1032, %v1033
      %v1035 = vrot.slane %v1034, 2
      %v1036 = vmax.f32 %v1034, %v1035
      %v1037 = vrot.slane %v1036, 1
      %v1038 = vmax.f32 %v1036, %v1037
      %v1039 = vmax.f32 %v696, %v698
      %v1040 = vmax.f32 %v1039, %v701
      %v1041 = vmax.f32 %v1040, %v703
      %v1042 = vmax.f32 %v1041, %v706
      %v1043 = vmax.f32 %v1042, %v708
      %v1044 = vmax.f32 %v1043, %v711
      %v1045 = vmax.f32 %v1044, %v713
      %v1046 = vrot.slane %v1045, 4
      %v1047 = vmax.f32 %v1045, %v1046
      %v1048 = vrot.slane %v1047, 2
      %v1049 = vmax.f32 %v1047, %v1048
      %v1050 = vrot.slane %v1049, 1
      %v1051 = vmax.f32 %v1049, %v1050
      %v1052 = vsel %vm1017, %v865, -inf
      %v1053 = vsel %vm1017, %v867, -inf
      %v1054 = vmax.f32 %v1052, %v1053
      %v1055 = vsel %vm1017, %v870, -inf
      %v1056 = vmax.f32 %v1054, %v1055
      %v1057 = vsel %vm1017, %v872, -inf
      %v1058 = vmax.f32 %v1056, %v1057
      %v1059 = vsel %vm1017, %v875, -inf
      %v1060 = vmax.f32 %v1058, %v1059
      %v1061 = vsel %vm1017, %v877, -inf
      %v1062 = vmax.f32 %v1060, %v1061
      %v1063 = vsel %vm1017, %v880, -inf
      %v1064 = vmax.f32 %v1062, %v1063
      %v1065 = vsel %vm1017, %v882, -inf
      %v1066 = vmax.f32 %v1064, %v1065
      %v1067 = vrot.slane %v1066, 4
      %v1068 = vmax.f32 %v1066, %v1067
      %v1069 = vrot.slane %v1068, 2
      %v1070 = vmax.f32 %v1068, %v1069
      %v1071 = vrot.slane %v1070, 1
      %v1072 = vmax.f32 %v1070, %v1071
      %v1073 = vmax.f32 %v716, %v718
      %v1074 = vmax.f32 %v1073, %v721
      %v1075 = vmax.f32 %v1074, %v723
      %v1076 = vmax.f32 %v1075, %v726
      %v1077 = vmax.f32 %v1076, %v728
      %v1078 = vmax.f32 %v1077, %v731
      %v1079 = vmax.f32 %v1078, %v733
      %v1080 = vrot.slane %v1079, 4
      %v1081 = vmax.f32 %v1079, %v1080
      %v1082 = vrot.slane %v1081, 2
      %v1083 = vmax.f32 %v1081, %v1082
      %v1084 = vrot.slane %v1083, 1
      %v1085 = vmax.f32 %v1083, %v1084
      %v1086 = vsel %vm1017, %v885, -inf
      %v1087 = vsel %vm1017, %v887, -inf
      %v1088 = vmax.f32 %v1086, %v1087
      %v1089 = vsel %vm1017, %v890, -inf
      %v1090 = vmax.f32 %v1088, %v1089
      %v1091 = vsel %vm1017, %v892, -inf
      %v1092 = vmax.f32 %v1090, %v1091
      %v1093 = vsel %vm1017, %v895, -inf
      %v1094 = vmax.f32 %v1092, %v1093
      %v1095 = vsel %vm1017, %v897, -inf
      %v1096 = vmax.f32 %v1094, %v1095
      %v1097 = vsel %vm1017, %v900, -inf
      %v1098 = vmax.f32 %v1096, %v1097
      %v1099 = vsel %vm1017, %v902, -inf
      %v1100 = vmax.f32 %v1098, %v1099
      %v1101 = vrot.slane %v1100, 4
      %v1102 = vmax.f32 %v1100, %v1101
      %v1103 = vrot.slane %v1102, 2
      %v1104 = vmax.f32 %v1102, %v1103
      %v1105 = vrot.slane %v1104, 1
      %v1106 = vmax.f32 %v1104, %v1105
      %v1107 = vmax.f32 %v736, %v738
      %v1108 = vmax.f32 %v1107, %v741
      %v1109 = vmax.f32 %v1108, %v743
      %v1110 = vmax.f32 %v1109, %v746
      %v1111 = vmax.f32 %v1110, %v748
      %v1112 = vmax.f32 %v1111, %v751
      %v1113 = vmax.f32 %v1112, %v753
      %v1114 = vrot.slane %v1113, 4
      %v1115 = vmax.f32 %v1113, %v1114
      %v1116 = vrot.slane %v1115, 2
      %v1117 = vmax.f32 %v1115, %v1116
      %v1118 = vrot.slane %v1117, 1
      %v1119 = vmax.f32 %v1117, %v1118
      %v1120 = vsel %vm1017, %v905, -inf
      %v1121 = vsel %vm1017, %v907, -inf
      %v1122 = vmax.f32 %v1120, %v1121
      %v1123 = vsel %vm1017, %v910, -inf
      %v1124 = vmax.f32 %v1122, %v1123
      %v1125 = vsel %vm1017, %v912, -inf
      %v1126 = vmax.f32 %v1124, %v1125
      %v1127 = vsel %vm1017, %v915, -inf
      %v1128 = vmax.f32 %v1126, %v1127
      %v1129 = vsel %vm1017, %v917, -inf
      %v1130 = vmax.f32 %v1128, %v1129
      %v1131 = vsel %vm1017, %v920, -inf
      %v1132 = vmax.f32 %v1130, %v1131
      %v1133 = vsel %vm1017, %v922, -inf
      %v1134 = vmax.f32 %v1132, %v1133
      %v1135 = vrot.slane %v1134, 4
      %v1136 = vmax.f32 %v1134, %v1135
      %v1137 = vrot.slane %v1136, 2
      %v1138 = vmax.f32 %v1136, %v1137
      %v1139 = vrot.slane %v1138, 1
      %v1140 = vmax.f32 %v1138, %v1139
      %v1141 = vmax.f32 %v756, %v758
      %v1142 = vmax.f32 %v1141, %v761
      %v1143 = vmax.f32 %v1142, %v763
      %v1144 = vmax.f32 %v1143, %v766
      %v1145 = vmax.f32 %v1144, %v768
      %v1146 = vmax.f32 %v1145, %v771
      %v1147 = vmax.f32 %v1146, %v773
      %v1148 = vrot.slane %v1147, 4
      %v1149 = vmax.f32 %v1147, %v1148
      %v1150 = vrot.slane %v1149, 2
      %v1151 = vmax.f32 %v1149, %v1150
      %v1152 = vrot.slane %v1151, 1
      %v1153 = vmax.f32 %v1151, %v1152
      %v1154 = vsel %vm1017, %v925, -inf
      %v1155 = vsel %vm1017, %v927, -inf
      %v1156 = vmax.f32 %v1154, %v1155
      %v1157 = vsel %vm1017, %v930, -inf
      %v1158 = vmax.f32 %v1156, %v1157
      %v1159 = vsel %vm1017, %v932, -inf
      %v1160 = vmax.f32 %v1158, %v1159
      %v1161 = vsel %vm1017, %v935, -inf
      %v1162 = vmax.f32 %v1160, %v1161
      %v1163 = vsel %vm1017, %v937, -inf
      %v1164 = vmax.f32 %v1162, %v1163
      %v1165 = vsel %vm1017, %v940, -inf
      %v1166 = vmax.f32 %v1164, %v1165
      %v1167 = vsel %vm1017, %v942, -inf
      %v1168 = vmax.f32 %v1166, %v1167
      %v1169 = vrot.slane %v1168, 4
      %v1170 = vmax.f32 %v1168, %v1169
      %v1171 = vrot.slane %v1170, 2
      %v1172 = vmax.f32 %v1170, %v1171
      %v1173 = vrot.slane %v1172, 1
      %v1174 = vmax.f32 %v1172, %v1173
      %v1175 = vmax.f32 %v776, %v778
      %v1176 = vmax.f32 %v1175, %v781
      %v1177 = vmax.f32 %v1176, %v783
      %v1178 = vmax.f32 %v1177, %v786
      %v1179 = vmax.f32 %v1178, %v788
      %v1180 = vmax.f32 %v1179, %v791
      %v1181 = vmax.f32 %v1180, %v793
      %v1182 = vrot.slane %v1181, 4
      %v1183 = vmax.f32 %v1181, %v1182
      %v1184 = vrot.slane %v1183, 2
      %v1185 = vmax.f32 %v1183, %v1184
      %v1186 = vrot.slane %v1185, 1
      %v1187 = vmax.f32 %v1185, %v1186
      %v1188 = vsel %vm1017, %v945, -inf
      %v1189 = vsel %vm1017, %v947, -inf
      %v1190 = vmax.f32 %v1188, %v1189
      %v1191 = vsel %vm1017, %v950, -inf
      %v1192 = vmax.f32 %v1190, %v1191
      %v1193 = vsel %vm1017, %v952, -inf
      %v1194 = vmax.f32 %v1192, %v1193
      %v1195 = vsel %vm1017, %v955, -inf
      %v1196 = vmax.f32 %v1194, %v1195
      %v1197 = vsel %vm1017, %v957, -inf
      %v1198 = vmax.f32 %v1196, %v1197
      %v1199 = vsel %vm1017, %v960, -inf
      %v1200 = vmax.f32 %v1198, %v1199
      %v1201 = vsel %vm1017, %v962, -inf
      %v1202 = vmax.f32 %v1200, %v1201
      %v1203 = vrot.slane %v1202, 4
      %v1204 = vmax.f32 %v1202, %v1203
      %v1205 = vrot.slane %v1204, 2
      %v1206 = vmax.f32 %v1204, %v1205
      %v1207 = vrot.slane %v1206, 1
      %v1208 = vmax.f32 %v1206, %v1207
      %v1209 = vmax.f32 %v796, %v798
      %v1210 = vmax.f32 %v1209, %v801
      %v1211 = vmax.f32 %v1210, %v803
      %v1212 = vmax.f32 %v1211, %v806
      %v1213 = vmax.f32 %v1212, %v808
      %v1214 = vmax.f32 %v1213, %v811
      %v1215 = vmax.f32 %v1214, %v813
      %v1216 = vrot.slane %v1215, 4
      %v1217 = vmax.f32 %v1215, %v1216
      %v1218 = vrot.slane %v1217, 2
      %v1219 = vmax.f32 %v1217, %v1218
      %v1220 = vrot.slane %v1219, 1
      %v1221 = vmax.f32 %v1219, %v1220
      %v1222 = vsel %vm1017, %v965, -inf
      %v1223 = vsel %vm1017, %v967, -inf
      %v1224 = vmax.f32 %v1222, %v1223
      %v1225 = vsel %vm1017, %v970, -inf
      %v1226 = vmax.f32 %v1224, %v1225
      %v1227 = vsel %vm1017, %v972, -inf
      %v1228 = vmax.f32 %v1226, %v1227
      %v1229 = vsel %vm1017, %v975, -inf
      %v1230 = vmax.f32 %v1228, %v1229
      %v1231 = vsel %vm1017, %v977, -inf
      %v1232 = vmax.f32 %v1230, %v1231
      %v1233 = vsel %vm1017, %v980, -inf
      %v1234 = vmax.f32 %v1232, %v1233
      %v1235 = vsel %vm1017, %v982, -inf
      %v1236 = vmax.f32 %v1234, %v1235
      %v1237 = vrot.slane %v1236, 4
      %v1238 = vmax.f32 %v1236, %v1237
      %v1239 = vrot.slane %v1238, 2
      %v1240 = vmax.f32 %v1238, %v1239
      %v1241 = vrot.slane %v1240, 1
      %v1242 = vmax.f32 %v1240, %v1241
      %v1243 = vmax.f32 %v816, %v818
      %v1244 = vmax.f32 %v1243, %v821
      %v1245 = vmax.f32 %v1244, %v823
      %v1246 = vmax.f32 %v1245, %v826
      %v1247 = vmax.f32 %v1246, %v828
      %v1248 = vmax.f32 %v1247, %v831
      %v1249 = vmax.f32 %v1248, %v833
      %v1250 = vrot.slane %v1249, 4
      %v1251 = vmax.f32 %v1249, %v1250
      %v1252 = vrot.slane %v1251, 2
      %v1253 = vmax.f32 %v1251, %v1252
      %v1254 = vrot.slane %v1253, 1
      %v1255 = vmax.f32 %v1253, %v1254
      %v1256 = vsel %vm1017, %v985, -inf
      %v1257 = vsel %vm1017, %v987, -inf
      %v1258 = vmax.f32 %v1256, %v1257
      %v1259 = vsel %vm1017, %v990, -inf
      %v1260 = vmax.f32 %v1258, %v1259
      %v1261 = vsel %vm1017, %v992, -inf
      %v1262 = vmax.f32 %v1260, %v1261
      %v1263 = vsel %vm1017, %v995, -inf
      %v1264 = vmax.f32 %v1262, %v1263
      %v1265 = vsel %vm1017, %v997, -inf
      %v1266 = vmax.f32 %v1264, %v1265
      %v1267 = vsel %vm1017, %v1000, -inf
      %v1268 = vmax.f32 %v1266, %v1267
      %v1269 = vsel %vm1017, %v1002, -inf
      %v1270 = vmax.f32 %v1268, %v1269
      %v1271 = vrot.slane %v1270, 4
      %v1272 = vmax.f32 %v1270, %v1271
      %v1273 = vrot.slane %v1272, 2
      %v1274 = vmax.f32 %v1272, %v1273
      %v1275 = vrot.slane %v1274, 1
      %v1276 = vmax.f32 %v1274, %v1275
      %v1277 = vld [vmem:[%s2] sm:$0x3]
      %v1279 = vperm.slane %v1277, 0
      %v1280 = vperm.slane %v1277, 1
      %v1283 = vadd.f32 %v1016, %v1279
      %v1284 = vadd.f32 %v1038, %v1280
      %v1285 = vadd.f32 %v1051, %v1279
      %v1286 = vadd.f32 %v1072, %v1280
      %v1287 = vadd.f32 %v1085, %v1279
      %v1288 = vadd.f32 %v1106, %v1280
      %v1289 = vadd.f32 %v1119, %v1279
      %v1290 = vadd.f32 %v1140, %v1280
      %v1291 = vadd.f32 %v1153, %v1279
      %v1292 = vadd.f32 %v1174, %v1280
      %v1293 = vadd.f32 %v1187, %v1279
      %v1294 = vadd.f32 %v1208, %v1280
      %v1295 = vadd.f32 %v1221, %v1279
      %v1296 = vadd.f32 %v1242, %v1280
      %v1297 = vadd.f32 %v1255, %v1279
      %v1298 = vadd.f32 %v1276, %v1280
      %v1299 = vld [vmem:[#allocation2] sm:$0xff]
      %v1300 = vpack.c.bf16 %v1283, %v1283
      %v1301 = vpack.c.bf16 %v1284, %v1284
      %v1302 = vpack.c.bf16 %v1285, %v1285
      %v1303 = vpack.c.bf16 %v1286, %v1286
      %v1304 = vpack.c.bf16 %v1287, %v1287
      %v1305 = vpack.c.bf16 %v1288, %v1288
      %v1306 = vpack.c.bf16 %v1289, %v1289
      %v1307 = vpack.c.bf16 %v1290, %v1290
      %v1308 = vpack.c.bf16 %v1291, %v1291
      %v1309 = vpack.c.bf16 %v1292, %v1292
      %v1310 = vpack.c.bf16 %v1293, %v1293
      %v1311 = vpack.c.bf16 %v1294, %v1294
      %v1312 = vpack.c.bf16 %v1295, %v1295
      %v1313 = vpack.c.bf16 %v1296, %v1296
      %v1314 = vpack.c.bf16 %v1297, %v1297
      %v1315 = vpack.c.bf16 %v1298, %v1298
      %v1316 = vld [vmem:[%s320] sm:$0xf]
      %v1317 = vld [vmem:[%s320 + $0x4] sm:$0xf]
      %v1318 = vld [vmem:[%s320 + $0x8] sm:$0xf]
      %v1319 = vld [vmem:[%s320 + $0xc] sm:$0xf]
      %v1320 = vld [vmem:[%s320 + $0x10] sm:$0xf]
      %v1321 = vld [vmem:[%s320 + $0x14] sm:$0xf]
      %v1322 = vld [vmem:[%s320 + $0x18] sm:$0xf]
      %v1323 = vld [vmem:[%s320 + $0x1c] sm:$0xf]
      %v1324 = vld [vmem:[%s320 + $0x20] sm:$0xf]
      %v1325 = vld [vmem:[%s320 + $0x24] sm:$0xf]
      %v1326 = vld [vmem:[%s320 + $0x28] sm:$0xf]
      %v1327 = vld [vmem:[%s320 + $0x2c] sm:$0xf]
      %v1328 = vld [vmem:[%s320 + $0x30] sm:$0xf]
      %v1329 = vld [vmem:[%s320 + $0x34] sm:$0xf]
      %v1330 = vld [vmem:[%s320 + $0x38] sm:$0xf]
      %v1331 = vld [vmem:[%s320 + $0x3c] sm:$0xf]
      %v1332 = vld [vmem:[%s320 + $0x40] sm:$0xf]
      %v1333 = vld [vmem:[%s320 + $0x44] sm:$0xf]
      %v1334 = vld [vmem:[%s320 + $0x48] sm:$0xf]
      %v1335 = vld [vmem:[%s320 + $0x4c] sm:$0xf]
      %v1336 = vld [vmem:[%s320 + $0x50] sm:$0xf]
      %v1337 = vld [vmem:[%s320 + $0x54] sm:$0xf]
      %v1338 = vld [vmem:[%s320 + $0x58] sm:$0xf]
      %v1339 = vld [vmem:[%s320 + $0x5c] sm:$0xf]
      %v1340 = vld [vmem:[%s320 + $0x60] sm:$0xf]
      %v1341 = vld [vmem:[%s320 + $0x64] sm:$0xf]
      %v1342 = vld [vmem:[%s320 + $0x68] sm:$0xf]
      %v1343 = vld [vmem:[%s320 + $0x6c] sm:$0xf]
      %v1344 = vld [vmem:[%s320 + $0x70] sm:$0xf]
      %v1345 = vld [vmem:[%s320 + $0x74] sm:$0xf]
      %v1362 = vunpack.c.l.b16 %v1300
      %v1363 = vunpack.c.l.b16 %v1301
      %v1364 = vunpack.c.l.b16 %v1302
      %v1365 = vunpack.c.l.b16 %v1303
      %v1366 = vunpack.c.l.b16 %v1304
      %v1367 = vunpack.c.l.b16 %v1305
      %v1368 = vunpack.c.l.b16 %v1306
      %v1369 = vunpack.c.l.b16 %v1307
      %v1370 = vunpack.c.l.b16 %v1308
      %v1371 = vunpack.c.l.b16 %v1309
      %v1372 = vunpack.c.l.b16 %v1310
      %v1373 = vunpack.c.l.b16 %v1311
      %v1374 = vunpack.c.l.b16 %v1312
      %v1375 = vunpack.c.l.b16 %v1313
      %v1376 = vunpack.c.l.b16 %v1314
      %v1377 = vunpack.c.l.b16 %v1315
      %v1378 = vrot.slane %v1364, 7
      %vm1379 = vcmask 1041409
      %v1380 = vsel %vm1379, %v1378, %v1362
      %v1381 = vrot.slane %v1366, 6
      %vm1382 = vcmask 1042434
      %v1383 = vsel %vm1382, %v1381, %v1380
      %v1384 = vrot.slane %v1368, 5
      %vm1385 = vcmask 1043459
      %v1386 = vsel %vm1385, %v1384, %v1383
      %v1387 = vrot.slane %v1370, 4
      %vm1388 = vcmask 1044484
      %v1389 = vsel %vm1388, %v1387, %v1386
      %v1390 = vrot.slane %v1372, 3
      %vm1391 = vcmask 1045509
      %v1392 = vsel %vm1391, %v1390, %v1389
      %v1393 = vrot.slane %v1374, 2
      %vm1394 = vcmask 1046534
      %v1395 = vsel %vm1394, %v1393, %v1392
      %v1396 = vrot.slane %v1376, 1
      %vm1397 = vcmask 1047559
      %v1398 = vsel %vm1397, %v1396, %v1395
      %v1399 = vrot.slane %v1365, 7
      %v1400 = vsel %vm1379, %v1399, %v1363
      %v1401 = vrot.slane %v1367, 6
      %v1402 = vsel %vm1382, %v1401, %v1400
      %v1403 = vrot.slane %v1369, 5
      %v1404 = vsel %vm1385, %v1403, %v1402
      %v1405 = vrot.slane %v1371, 4
      %v1406 = vsel %vm1388, %v1405, %v1404
      %v1407 = vrot.slane %v1373, 3
      %v1408 = vsel %vm1391, %v1407, %v1406
      %v1409 = vrot.slane %v1375, 2
      %v1410 = vsel %vm1394, %v1409, %v1408
      %v1411 = vrot.slane %v1377, 1
      %v1412 = vsel %vm1397, %v1411, %v1410
      %v1413 = vpack.c.b16 %v1398, %v1398
      %v1414 = vpack.c.b16 %v1412, %v1412
      %v1446 = vunpack.c.l.b16 %v1316
      %v1447 = vunpack.c.l.b16 %v1317
      %v1448 = vunpack.c.l.b16 %v1318
      %v1449 = vunpack.c.l.b16 %v1319
      %v1450 = vunpack.c.l.b16 %v1320
      %v1451 = vunpack.c.l.b16 %v1321
      %v1452 = vunpack.c.l.b16 %v1322
      %v1453 = vunpack.c.l.b16 %v1323
      %v1454 = vunpack.c.l.b16 %v1324
      %v1455 = vunpack.c.l.b16 %v1325
      %v1456 = vunpack.c.l.b16 %v1326
      %v1457 = vunpack.c.l.b16 %v1327
      %v1458 = vunpack.c.l.b16 %v1328
      %v1459 = vunpack.c.l.b16 %v1329
      %v1460 = vunpack.c.l.b16 %v1330
      %v1461 = vunpack.c.l.b16 %v1331
      %v1462 = vunpack.c.l.b16 %v1332
      %v1463 = vunpack.c.l.b16 %v1333
      %v1464 = vunpack.c.l.b16 %v1334
      %v1465 = vunpack.c.l.b16 %v1335
      %v1466 = vunpack.c.l.b16 %v1336
      %v1467 = vunpack.c.l.b16 %v1337
      %v1468 = vunpack.c.l.b16 %v1338
      %v1469 = vunpack.c.l.b16 %v1339
      %v1470 = vunpack.c.l.b16 %v1340
      %v1471 = vunpack.c.l.b16 %v1341
      %v1472 = vunpack.c.l.b16 %v1342
      %v1473 = vunpack.c.l.b16 %v1343
      %v1474 = vunpack.c.l.b16 %v1344
      %v1475 = vunpack.c.l.b16 %v1345
      %v1476 = vpack.c.b16 %v1447, %v1446
      %v1477 = vpack.c.b16 %v1449, %v1448
      %v1478 = vpack.c.b16 %v1451, %v1450
      %v1479 = vpack.c.b16 %v1453, %v1452
      %v1480 = vpack.c.b16 %v1455, %v1454
      %v1481 = vpack.c.b16 %v1457, %v1456
      %v1482 = vpack.c.b16 %v1459, %v1458
      %v1483 = vpack.c.b16 %v1461, %v1460
      %v1484 = vpack.c.b16 %v1463, %v1462
      %v1485 = vpack.c.b16 %v1465, %v1464
      %v1486 = vpack.c.b16 %v1467, %v1466
      %v1487 = vpack.c.b16 %v1469, %v1468
      %v1488 = vpack.c.b16 %v1471, %v1470
      %v1489 = vpack.c.b16 %v1473, %v1472
      %v1490 = vpack.c.b16 %v1475, %v1474
      %v1507 = vsel %vm1017, %v1414, 0
      %1509 = vmatpush.bf16.msra.mxu0 %v1483
      %1510 = vmatpush.bf16.msra.mxu0 %v1482
      %1511 = vmatpush.bf16.msra.mxu0 %v1481
      %1512 = vmatpush.bf16.msra.mxu0 %v1480
      %1513 = vmatpush.bf16.msra.mxu0 %v1479
      %1514 = vmatpush.bf16.msra.mxu0 %v1478
      %1515 = vmatpush.bf16.msra.mxu0 %v1477
      %1516 = vmatpush.bf16.msra.mxu0 %v1476
      %1517 = vmatmul.bf16.gmra.mxu0 %v1413
      %v1518 = vpop.f32.mrf.mxu0
      %v1519 = vadd.f32 0.0, %v1518
      %v1520 = vpop.f32.mrf.mxu0
      %1521 = vdwg.mxu0
      %1522 = vmatpush.bf16.msra.mxu0 0
      %1523 = vmatpush.bf16.msra.mxu0 %v1490
      %1524 = vmatpush.bf16.msra.mxu0 %v1489
      %1525 = vmatpush.bf16.msra.mxu0 %v1488
      %1526 = vmatpush.bf16.msra.mxu0 %v1487
      %1527 = vmatpush.bf16.msra.mxu0 %v1486
      %1528 = vmatpush.bf16.msra.mxu0 %v1485
      %1529 = vmatpush.bf16.msra.mxu0 %v1484
      %1530 = vmatmul.bf16.gmra.mxu0 %v1507
      %v1531 = vpop.f32.mrf.mxu0
      %v1532 = vadd.f32 %v1519, %v1531
      %v1533 = vpop.f32.mrf.mxu0
      %1534 = vdwg.mxu0
      %v1535 = vadd.f32 %v1299, %v1532
      %vm1536 = vcmask 326656
      %1537 = vst.msk [vmem:[#allocation2] sm:$0xff] %vm1536, %v1535
      %p1538 = scmp.eq.s32.totalorder %s23, 15
      // Predicated region
      $region53: #{tpu_custom_call.1} parent=47 // pred_check
        %p1539 = pneg %p1538
      $region54: #{tpu_custom_call.1} parent=47 // pred_check_branch
        %1541 = sbr.rel (%p1539) target = $region56
      $region55: #{tpu_custom_call.1} parent=47 // pred_region
        %v1542 = vld [vmem:[#allocation2] sm:$0xff]
        %v1543 = vld [vmem:[%s4] sm:$0x1]
        %v1545 = vperm.slane %v1543, 0
        %v1547 = vadd.f32 %v1542, %v1545
        %v1548 = vmax.f32 %v1547, 0.0
        %v1549 = vld [vmem:[%s5] sm:$0xff]
        %v1550 = vld [vmem:[%s5 + $0x8] sm:$0xff]
        %v1551 = vld [vmem:[%s5 + $0x10] sm:$0xff]
        %v1552 = vld [vmem:[%s5 + $0x18] sm:$0xff]
        %v1553 = vld [vmem:[%s5 + $0x20] sm:$0xff]
        %v1554 = vld [vmem:[%s6] sm:$0x1]
        %v1556 = vperm.slane %v1554, 0
        %v1559 = vsel %vm1536, %v1548, 0
        %1561 = vmatpush.msra.mxu0 0.0
        %1562 = vmatpush.msra.mxu0 0.0
        %1563 = vmatpush.msra.mxu0 0.0
        %1564 = vmatpush.msra.mxu0 0.0
        %1565 = vmatpush.msra.mxu0 0.0
        %1566 = vmatpush.msra.mxu0 0.0
        %1567 = vmatpush.msra.mxu0 0.0
        %1568 = vmatpush.msra.mxu0 0.0
        %1569 = vmatpush.msra.mxu0 0.0
        %1570 = vmatpush.msra.mxu0 0.0
        %1571 = vmatpush.msra.mxu0 0.0
        %1572 = vmatpush.msra.mxu0 %v1553
        %1573 = vmatpush.msra.mxu0 %v1552
        %1574 = vmatpush.msra.mxu0 %v1551
        %1575 = vmatpush.msra.mxu0 %v1550
        %1576 = vmatpush.msra.mxu0 %v1549
        %1577 = vmatmul.f32.gmra.mxu0 %v1559
        %v1578 = vpop.f32.mrf.mxu0
        %v1579 = vadd.f32 %v1556, %v1578
        %1580 = vdwg.mxu0
        %1581 = vst.msk [vmem:[%s324] sm:$0xff] %vm561, %v1579
      $region56: #{tpu_custom_call.1} parent=47 // pred_fallthru
        _
      %p1582 = scmp.lt.s32.totalorder %s22, 0
      %s1583 = scalar_select %p1582, %s22, 0
      %s1584 = smul.addr %s1583, 8
      %s1585 = scalar_lea.vmem %s7, %s1584
      // Predicated region
      $region57: #{tpu_custom_call.1} parent=47 // pred_check
        %p1586 = pneg %p207
      $region58: #{tpu_custom_call.1} parent=47 // pred_check_branch
        %1588 = sbr.rel (%p1586) target = $region60
      $region59: #{tpu_custom_call.1} parent=47 // pred_region
        _
      $region60: #{tpu_custom_call.1} parent=47 // pred_fallthru
        _
      // Predicated region
      $region61: #{tpu_custom_call.1} parent=47 // pred_check
        %p1589 = pneg %p207
      $region62: #{tpu_custom_call.1} parent=47 // pred_check_branch
        %1591 = sbr.rel (%p1589) target = $region64
      $region63: #{tpu_custom_call.1} parent=47 // pred_region
        %p1592 = scmp.lt.s32.totalorder %s22, 0
        %s1593 = scalar_select %p1592, %s22, 0
        %s1594 = smul.addr %s1593, 8
        %s1595 = scalar_lea.vmem %s7, %s1594
      $region64: #{tpu_custom_call.1} parent=47 // pred_fallthru
        _
    $region48: #{tpu_custom_call.1} parent=5 // pred_fallthru
      _
    %p1596 = scmp.le.s32.totalorder 2, %s13
    // Predicated region
    $region65: #{tpu_custom_call.1} parent=5 // pred_check
      %p1597 = pneg %p1596
    $region66: #{tpu_custom_call.1} parent=5 // pred_check_branch
      %1599 = sbr.rel (%p1597) target = $region68
    $region67: #{tpu_custom_call.1} parent=5 // pred_region
      %s1600 = ssub.s32 %s13, 2
    $region68: #{tpu_custom_call.1} parent=5 // pred_fallthru
      _
  $region6: #{tpu_custom_call.1} parent=0 // loop_footer
    %s17 = sadd.s32 1, %s13
  $region7: #{tpu_custom_call.1} parent=0 // loop_footer_branch
    %12 = sbr.rel target = $region3
  $region8: #{tpu_custom_call.1} parent=0 // loop_exit
    _

</llo_original>
